<compile_context>
chip_gen: v7x
topology: tpu7x:2x2x1
jax: 0.10.0
libtpu: 0.0.40
codegen_flags: <defaults>
</compile_context>

<pallas_src>
import math

import jax
import jax.numpy as jnp
from jax.experimental import pallas as pl
from jax.experimental.pallas import tpu as pltpu


def _round_up(n, m):
    return ((n + m - 1) // m) * m


def _pad_to(a, shape):
    return jnp.pad(a, [(0, s - d) for s, d in zip(shape, a.shape)])


def _vmem_capacity_bytes():
    """Physical per-core VMEM (generation-aware); conservative fallback = v7x 64 MiB."""
    try:
        return int(pltpu.get_tpu_info().vmem_capacity_bytes)
    except Exception:
        return 64 * 2 ** 20


def _make_fused_kernel(n_layers, compute_dtype):
    """Build the fused FC-stack kernel for a fixed layer count."""

    def kernel(*refs):
        onehot_ref = refs[0]
        x_ref = refs[1]
        layer_refs = refs[2:2 + 4 * n_layers]          # (w_x, w_cat, gamma, beta) per layer
        o_ref = refs[2 + 4 * n_layers]
        acc_ref = refs[3 + 4 * n_layers]

        k = pl.program_id(0)

        @pl.when(k == 0)
        def _init():
            # Seed the accumulator with layer-0's categorical contribution: this moves a
            # serial epilogue matmul into the pipelined K loop where it hides under the
            # layer-0 weight DMA.
            acc_ref[...] = jnp.dot(onehot_ref[...], layer_refs[1][...],
                                   preferred_element_type=jnp.float32)

        # Layer-0 partial matmul for this K tile (MXU, f32 accumulation).
        acc_ref[...] += jnp.dot(x_ref[...], layer_refs[0][...],
                                preferred_element_type=jnp.float32)

        @pl.when(k == pl.num_programs(0) - 1)
        def _epilogue():
            onehot = onehot_ref[...]
            h = acc_ref[...]
            for l in range(n_layers):
                w_x_ref, w_cat_ref, gamma_ref, beta_ref = layer_refs[4 * l:4 * l + 4]
                if l > 0:
                    h = jnp.dot(h.astype(compute_dtype), w_x_ref[...],
                                preferred_element_type=jnp.float32)
                    # Categorical covariate contribution (replaces the per-layer concat).
                    h = h + jnp.dot(onehot, w_cat_ref[...],
                                    preferred_element_type=jnp.float32)
                # NOTE: the Linear bias is omitted on purpose; train-mode BatchNorm
                # subtracts the batch mean, which cancels any pre-BN bias exactly.
                # BatchNorm1d, training mode: batch stats, biased variance, eps=1e-3.
                mean = jnp.mean(h, axis=0, keepdims=True)
                cent = h - mean
                var = jnp.mean(cent * cent, axis=0, keepdims=True)
                scale = gamma_ref[...] * jax.lax.rsqrt(var + 1e-3)  # gamma folded into rsqrt
                h = jnp.maximum(cent * scale + beta_ref[...], 0.0)   # ReLU
                # TODO(synk): nn.Dropout(p=0.1) in training mode is applied as identity;
                # a torch-matching RNG stream cannot be reproduced (could otherwise use
                # pltpu.prng_seed + pltpu.prng_random_bits for an inverted-dropout mask).
                # TODO(synk): if profiling ever shows this epilogue XLU-bound at very
                # large B, compute the BN column sums via ones(1,B) @ h MXU matmuls.
            o_ref[...] = h.astype(o_ref.dtype)

    return kernel


def _vmem_limit_bytes(B, k_tile, cat_dim_eff, layer_params, compute_dtype, out_dtype):
    """Shape/generation-aware VMEM limit (resident operands counted single-buffered)."""
    itemsize = jnp.dtype(compute_dtype).itemsize
    h0_pad = layer_params[0][0].shape[1]
    h_max_pad = max(w_x.shape[1] for (w_x, _, _, _) in layer_params)
    h_last_pad = layer_params[-1][0].shape[1]
    est = 2 * (B * k_tile + k_tile * h0_pad) * itemsize        # double-buffered K stream
    est += B * cat_dim_eff * itemsize                           # resident one-hot block
    for l, (w_x, w_cat, gamma, beta) in enumerate(layer_params):
        if l > 0:
            est += w_x.size * itemsize                          # resident later-layer weights
        est += w_cat.size * itemsize + (gamma.size + beta.size) * 4
    est += B * h0_pad * 4                                       # f32 accumulator scratch
    est += 4 * B * h_max_pad * 4                                # epilogue f32 temporaries
    est += 2 * B * h_last_pad * jnp.dtype(out_dtype).itemsize   # output block
    est += 4 * 2 ** 20                                          # slack for compiler temps
    cap = _vmem_capacity_bytes()
    # ~48 MiB ceiling on v7x (64 MiB physical), ~96 MiB on v5e/v6e (128 MiB physical).
    return int(min(max(est, 16 * 2 ** 20), (3 * cap) // 4))


def _cost_estimate(B, din0_pad, cat_dim_eff, layer_params, compute_dtype, out_dtype):
    """Advisory cost hint so XLA schedules the surrounding ops realistically."""
    itemsize = jnp.dtype(compute_dtype).itemsize
    flops = 0
    transcendentals = 0
    bytes_accessed = B * din0_pad * itemsize + B * cat_dim_eff * itemsize
    for w_x, w_cat, gamma, beta in layer_params:
        dout = w_x.shape[1]
        flops += 2 * B * w_x.shape[0] * dout       # main matmul
        flops += 2 * B * w_cat.shape[0] * dout     # categorical matmul
        flops += 8 * B * dout                      # BN + ReLU elementwise
        transcendentals += dout                    # rsqrt per output column
        bytes_accessed += (w_x.size + w_cat.size) * itemsize + (gamma.size + beta.size) * 4
    bytes_accessed += B * layer_params[-1][0].shape[1] * jnp.dtype(out_dtype).itemsize
    return pl.CostEstimate(flops=int(flops), transcendentals=int(transcendentals),
                           bytes_accessed=int(bytes_accessed))


def fc_stack_forward(x_pad, onehot, layer_params, *, k_tile, compute_dtype, out_dtype):
    """Run the fused Linear+BN+ReLU stack in a single pallas_call."""
    B, din0_pad = x_pad.shape
    assert din0_pad % k_tile == 0
    num_k = din0_pad // k_tile
    n_layers = len(layer_params)
    cat_dim_eff = onehot.shape[1]
    h0_pad = layer_params[0][0].shape[1]
    h_last_pad = layer_params[-1][0].shape[1]

    vmem_limit = _vmem_limit_bytes(B, k_tile, cat_dim_eff, layer_params,
                                   compute_dtype, out_dtype)
    cost = _cost_estimate(B, din0_pad, cat_dim_eff, layer_params,
                          compute_dtype, out_dtype)

    def build_and_run(single_buffer_residents):
        def resident(shape):
            # Constant block index across the K grid -> double-buffering is pure VMEM
            # waste; request a single buffer.
            if single_buffer_residents:
                return pl.BlockSpec(shape, lambda k: (0,) * len(shape),
                                    pipeline_mode=pl.Buffered(1))
            return pl.BlockSpec(shape, lambda k: (0,) * len(shape))

        in_specs = [
            resident((B, cat_dim_eff)),                       # one-hot covariates (resident)
            pl.BlockSpec((B, k_tile), lambda k: (0, k)),      # layer-0 input, K-streamed
        ]
        inputs = [onehot, x_pad]
        for l, (w_x, w_cat, gamma, beta) in enumerate(layer_params):
            if l == 0:
                in_specs.append(pl.BlockSpec((k_tile, h0_pad), lambda k: (k, 0)))  # K-streamed
            else:
                in_specs.append(resident(w_x.shape))                               # resident
            in_specs.append(resident(w_cat.shape))
            in_specs.append(resident(gamma.shape))
            in_specs.append(resident(beta.shape))
            inputs += [w_x, w_cat, gamma, beta]

        return pl.pallas_call(
            _make_fused_kernel(n_layers, compute_dtype),
            out_shape=jax.ShapeDtypeStruct((B, h_last_pad), out_dtype),
            grid_spec=pltpu.PrefetchScalarGridSpec(
                num_scalar_prefetch=0,
                grid=(num_k,),
                in_specs=in_specs,
                out_specs=pl.BlockSpec((B, h_last_pad), lambda k: (0, 0)),
                scratch_shapes=[pltpu.VMEM((B, h0_pad), jnp.float32)],
            ),
            compiler_params=pltpu.CompilerParams(
                dimension_semantics=("arbitrary",),   # K is a reduction axis
                vmem_limit_bytes=vmem_limit,
            ),
            cost_estimate=cost,
        )(*inputs)

    try:
        return build_and_run(True)
    except Exception:
        # Safety net: if this jax build rejects pl.Buffered(1) on pallas_call operands,
        # fall back to default double-buffering (identical math, slightly more VMEM).
        return build_and_run(False)


class FCLayersPallas:
    """JAX/Pallas port of vi.models.modules.FCLayers (2-D input path, training-mode BN)."""

    def __init__(self, key, n_in, n_out, n_cat_list=(), n_layers=1, n_hidden=128,
                 dropout_rate=0.1, compute_dtype=jnp.bfloat16, k_tile=None):
        self.n_cat_list = [n_cat if n_cat > 1 else 0 for n_cat in n_cat_list]
        self.cat_dim = sum(self.n_cat_list)
        self.cat_dim_eff = max(self.cat_dim, 1)   # dummy zero column when no covariates
        self.compute_dtype = compute_dtype
        self.dropout_rate = dropout_rate          # applied as identity (see kernel TODO)

        layers_dim = [n_in] + (n_layers - 1) * [n_hidden] + [n_out]
        self.in_dims = layers_dim[:-1]
        self.out_dims = layers_dim[1:]
        self.out_dims_pad = [_round_up(d, 128) for d in self.out_dims]  # lane-dense outputs

        # --- K tiling for the (potentially huge) first-layer input dimension. ---
        # Sized from the per-generation VMEM budget rather than a hard 512 cap: small
        # tiles are dominated by the ~0.35 us per-grid-step overhead, so prefer the whole
        # padded Din in one step when its double-buffered stream fits ~35% of VMEM
        # (nominal batch <= 512 rows), else the largest of {2048, 1024, 512, 256, 128}.
        din0_128 = _round_up(self.in_dims[0], 128)
        h0_pad = self.out_dims_pad[0]
        itemsize = jnp.dtype(compute_dtype).itemsize
        stream_budget = int(0.35 * _vmem_capacity_bytes())
        b_nominal = 512

        def stream_bytes(kt):
            return 2 * (b_nominal * kt + kt * h0_pad) * itemsize

        if k_tile is not None:
            self.k_tile = k_tile
        elif stream_bytes(din0_128) <= stream_budget:
            self.k_tile = din0_128                       # whole Din in a single grid step
        else:
            self.k_tile = 128
            for cand in (2048, 1024, 512, 256):
                if cand <= din0_128 and stream_bytes(cand) <= stream_budget:
                    self.k_tile = cand
                    break
        self.din0_pad = _round_up(self.in_dims[0], self.k_tile)

        self.layers = []
        for l, (din, dout) in enumerate(zip(self.in_dims, self.out_dims)):
            fan_in = din + self.cat_dim
            bound = 1.0 / math.sqrt(fan_in)
            key, k_w = jax.random.split(key)
            # torch nn.Linear default init: U(-1/sqrt(fan_in), 1/sqrt(fan_in)).
            # The Linear bias is omitted: train-mode BN cancels it exactly.
            w = jax.random.uniform(k_w, (fan_in, dout), jnp.float32, -bound, bound)
            w_x, w_cat = w[:din], w[din:]
            if self.cat_dim == 0:
                w_cat = jnp.zeros((1, dout), jnp.float32)

            din_pad = self.din0_pad if l == 0 else self.out_dims_pad[l - 1]
            dout_pad = self.out_dims_pad[l]
            w_x = _pad_to(w_x, (din_pad, dout_pad)).astype(compute_dtype)
            w_cat = _pad_to(w_cat, (self.cat_dim_eff, dout_pad)).astype(compute_dtype)
            gamma = jnp.ones((1, dout_pad), jnp.float32)   # BatchNorm weight
            beta = jnp.zeros((1, dout_pad), jnp.float32)   # BatchNorm bias
            self.layers.append((w_x, w_cat, gamma, beta))

    # --- helpers shared by the kernel path and the pure-JAX reference ---
    def _build_onehot(self, batch, cat_list):
        assert len(self.n_cat_list) <= len(cat_list), (
            "nb. categorical args provided doesn't match init. params.")
        one_hots = []
        for n_cat, cat in zip(self.n_cat_list, cat_list):
            assert not (n_cat and cat is None), (
                "cat not provided while n_cat != 0 in init. params.")
            if n_cat > 1:
                cat = jnp.asarray(cat)
                if cat.ndim == 2 and cat.shape[1] == n_cat:
                    oh = cat.astype(jnp.float32)
                else:
                    oh = jax.nn.one_hot(cat.reshape(-1), n_cat, dtype=jnp.float32)
                one_hots.append(oh)
        if one_hots:
            return jnp.concatenate(one_hots, axis=-1)
        return jnp.zeros((batch, 1), jnp.float32)

    def _pad_input(self, x):
        pad = self.din0_pad - x.shape[1]
        if pad:
            x = jnp.pad(x, ((0, 0), (0, pad)))
        return x

    def __call__(self, x, *cat_list):
        assert x.ndim == 2, "only the 2-D (batch, features) path is implemented"
        # TODO(synk): 3-D input path (per-slice BatchNorm) not implemented.
        out_dtype = x.dtype   # emit in the caller's dtype (halves writeback for bf16 callers)
        onehot = self._build_onehot(x.shape[0], cat_list).astype(self.compute_dtype)
        x_pad = self._pad_input(x).astype(self.compute_dtype)
        out_pad = fc_stack_forward(x_pad, onehot, self.layers,
                                   k_tile=self.k_tile,
                                   compute_dtype=self.compute_dtype,
                                   out_dtype=out_dtype)
        return out_pad[:, :self.out_dims[-1]]

    def reference(self, x, *cat_list):
        """Pure-JAX f32 reference of the same math (for correctness checks)."""
        onehot = self._build_onehot(x.shape[0], cat_list).astype(jnp.float32)
        h = self._pad_input(x).astype(jnp.float32)
        hp = jax.lax.Precision.HIGHEST
        for w_x, w_cat, gamma, beta in self.layers:
            h = (jnp.dot(h, w_x.astype(jnp.float32), precision=hp)
                 + jnp.dot(onehot, w_cat.astype(jnp.float32), precision=hp))
            mean = jnp.mean(h, axis=0, keepdims=True)
            cent = h - mean
            var = jnp.mean(cent * cent, axis=0, keepdims=True)
            h = jnp.maximum(cent * (gamma * jax.lax.rsqrt(var + 1e-3)) + beta, 0.0)
        return h[:, :self.out_dims[-1]]


if __name__ == "__main__":
    key = jax.random.PRNGKey(0)
    k_param, k_x, k_cat = jax.random.split(key, 3)

    batch, n_in, n_out, n_hidden, n_cat = 8, 32, 16, 32, 4

    x = jax.random.normal(k_x, (batch, n_in), dtype=jnp.float32)
    cat0 = jax.random.randint(k_cat, (batch,), 0, n_cat, dtype=jnp.int32)

    # f32 compute path (bitwise-matching debug mode): validate against the reference.
    model_f32 = FCLayersPallas(k_param, n_in=n_in, n_out=n_out, n_cat_list=[n_cat],
                               n_layers=2, n_hidden=n_hidden,
                               compute_dtype=jnp.float32)
    out = jax.block_until_ready(model_f32(x, cat0))
    ref = jax.block_until_ready(model_f32.reference(x, cat0))
    assert out.shape == (batch, n_out), out.shape
    assert jnp.all(jnp.isfinite(out))
    assert jnp.allclose(out, ref, rtol=5e-2, atol=5e-2), float(jnp.max(jnp.abs(out - ref)))

    # bf16-matmul path (MXU-native default on all generations): runs and is finite.
    model_bf16 = FCLayersPallas(k_param, n_in=n_in, n_out=n_out, n_cat_list=[n_cat],
                                n_layers=2, n_hidden=n_hidden,
                                compute_dtype=jnp.bfloat16)
    out_bf16 = jax.block_until_ready(model_bf16(x, cat0))
    assert out_bf16.shape == (batch, n_out), out_bf16.shape
    assert jnp.all(jnp.isfinite(out_bf16))

    print("KERNEL_OK")
</pallas_src>

<mosaic_0001>
module attributes {stable_mosaic.version = 11 : i64} {
  func.func @kernel(%arg0: i32, %arg1: memref<8x4xf32, #tpu.memory_space<vmem>>, %arg2: memref<8x128xf32, #tpu.memory_space<vmem>>, %arg3: memref<128x128xf32, #tpu.memory_space<vmem>>, %arg4: memref<4x128xf32, #tpu.memory_space<vmem>>, %arg5: memref<1x128xf32, #tpu.memory_space<vmem>>, %arg6: memref<1x128xf32, #tpu.memory_space<vmem>>, %arg7: memref<128x128xf32, #tpu.memory_space<vmem>>, %arg8: memref<4x128xf32, #tpu.memory_space<vmem>>, %arg9: memref<1x128xf32, #tpu.memory_space<vmem>>, %arg10: memref<1x128xf32, #tpu.memory_space<vmem>>, %arg11: memref<8x128xf32, #tpu.memory_space<vmem>>, %arg12: memref<8x128xf32, #tpu.memory_space<vmem>>) attributes {dimension_semantics = [#tpu.dimension_semantics<arbitrary>], iteration_bounds = array<i64: 1>, scalar_prefetch = 0 : i64, scratch_operands = 1 : i64, tpu.core_type = #tpu.core_type<tc>, window_params = [{pipeline_mode = #tpu.pipeline_mode<synchronous>, transform_indices = @transform_0, window_bounds = array<i64: 8, 4>}, {transform_indices = @transform_1, window_bounds = array<i64: 8, 128>}, {transform_indices = @transform_2, window_bounds = array<i64: 128, 128>}, {pipeline_mode = #tpu.pipeline_mode<synchronous>, transform_indices = @transform_3, window_bounds = array<i64: 4, 128>}, {pipeline_mode = #tpu.pipeline_mode<synchronous>, transform_indices = @transform_4, window_bounds = array<i64: 1, 128>}, {pipeline_mode = #tpu.pipeline_mode<synchronous>, transform_indices = @transform_5, window_bounds = array<i64: 1, 128>}, {pipeline_mode = #tpu.pipeline_mode<synchronous>, transform_indices = @transform_6, window_bounds = array<i64: 128, 128>}, {pipeline_mode = #tpu.pipeline_mode<synchronous>, transform_indices = @transform_7, window_bounds = array<i64: 4, 128>}, {pipeline_mode = #tpu.pipeline_mode<synchronous>, transform_indices = @transform_8, window_bounds = array<i64: 1, 128>}, {pipeline_mode = #tpu.pipeline_mode<synchronous>, transform_indices = @transform_9, window_bounds = array<i64: 1, 128>}, {pipeline_mode = #tpu.pipeline_mode<synchronous>, transform_indices = @transform_10, window_bounds = array<i64: 8, 128>}]} {
    %c0_i32 = arith.constant 0 : i32
    %0 = arith.cmpi eq, %arg0, %c0_i32 : i32
    %1 = arith.extui %0 : i1 to i32
    %c0_i32_0 = arith.constant 0 : i32
    %2 = arith.cmpi ne, %1, %c0_i32_0 : i32
    scf.if %2 {
      %c0_10 = arith.constant 0 : index
      %c0_11 = arith.constant 0 : index
      %12 = vector.load %arg1[%c0_10, %c0_11] : memref<8x4xf32, #tpu.memory_space<vmem>>, vector<8x4xf32>
      %c0_12 = arith.constant 0 : index
      %c0_13 = arith.constant 0 : index
      %13 = vector.load %arg4[%c0_12, %c0_13] : memref<4x128xf32, #tpu.memory_space<vmem>>, vector<4x128xf32>
      %cst_14 = arith.constant dense<0.000000e+00> : vector<8x128xf32>
      %14 = tpu.matmul %12, %13, %cst_14 {dimension_numbers = #tpu.dot_dimension_numbers<[1], [0], [0], [1], [0, 0, 1, 1], [], []>} : vector<8x4xf32>, vector<4x128xf32>, vector<8x128xf32> -> vector<8x128xf32>
      %c0_15 = arith.constant 0 : index
      %c0_16 = arith.constant 0 : index
      %15 = vector.load %arg12[%c0_15, %c0_16] : memref<8x128xf32, #tpu.memory_space<vmem>>, vector<8x128xf32>
      tpu.vector_store %arg12[%c0_15, %c0_16], %14 {strides = array<i32>} : memref<8x128xf32, #tpu.memory_space<vmem>>, vector<8x128xf32>,
    } else {
    }
    %c0 = arith.constant 0 : index
    %c0_1 = arith.constant 0 : index
    %3 = vector.load %arg12[%c0, %c0_1] : memref<8x128xf32, #tpu.memory_space<vmem>>, vector<8x128xf32>
    %c0_2 = arith.constant 0 : index
    %c0_3 = arith.constant 0 : index
    %4 = vector.load %arg2[%c0_2, %c0_3] : memref<8x128xf32, #tpu.memory_space<vmem>>, vector<8x128xf32>
    %c0_4 = arith.constant 0 : index
    %c0_5 = arith.constant 0 : index
    %5 = vector.load %arg3[%c0_4, %c0_5] : memref<128x128xf32, #tpu.memory_space<vmem>>, vector<128x128xf32>
    %cst = arith.constant dense<0.000000e+00> : vector<8x128xf32>
    %6 = tpu.matmul %4, %5, %cst {dimension_numbers = #tpu.dot_dimension_numbers<[1], [0], [0], [1], [0, 0, 1, 1], [], []>} : vector<8x128xf32>, vector<128x128xf32>, vector<8x128xf32> -> vector<8x128xf32>
    %7 = arith.addf %3, %6 : vector<8x128xf32>
    %c0_6 = arith.constant 0 : index
    %c0_7 = arith.constant 0 : index
    %8 = vector.load %arg12[%c0_6, %c0_7] : memref<8x128xf32, #tpu.memory_space<vmem>>, vector<8x128xf32>
    tpu.vector_store %arg12[%c0_6, %c0_7], %7 {strides = array<i32>} : memref<8x128xf32, #tpu.memory_space<vmem>>, vector<8x128xf32>,
    %c0_i32_8 = arith.constant 0 : i32
    %9 = arith.cmpi eq, %arg0, %c0_i32_8 : i32
    %10 = arith.extui %9 : i1 to i32
    %c0_i32_9 = arith.constant 0 : i32
    %11 = arith.cmpi ne, %10, %c0_i32_9 : i32
    scf.if %11 {
      %c0_10 = arith.constant 0 : index
      %c0_11 = arith.constant 0 : index
      %12 = vector.load %arg1[%c0_10, %c0_11] : memref<8x4xf32, #tpu.memory_space<vmem>>, vector<8x4xf32>
      %c0_12 = arith.constant 0 : index
      %c0_13 = arith.constant 0 : index
      %13 = vector.load %arg12[%c0_12, %c0_13] : memref<8x128xf32, #tpu.memory_space<vmem>>, vector<8x128xf32>
      %cst_14 = arith.constant dense<0.000000e+00> : vector<128xf32>
      %14 = vector.multi_reduction <add>, %13, %cst_14 [0] : vector<8x128xf32> to vector<128xf32>
      %15 = vector.shape_cast %14 : vector<128xf32> to vector<1x128xf32>
      %cst_15 = arith.constant 8.000000e+00 : f32
      %16 = vector.broadcast %cst_15 : f32 to vector<1x128xf32>
      %17 = arith.divf %15, %16 : vector<1x128xf32>
      %18 = vector.broadcast %17 : vector<1x128xf32> to vector<8x128xf32>
      %19 = arith.subf %13, %18 : vector<8x128xf32>
      %20 = arith.mulf %19, %19 : vector<8x128xf32>
      %cst_16 = arith.constant dense<0.000000e+00> : vector<128xf32>
      %21 = vector.multi_reduction <add>, %20, %cst_16 [0] : vector<8x128xf32> to vector<128xf32>
      %22 = vector.shape_cast %21 : vector<128xf32> to vector<1x128xf32>
      %cst_17 = arith.constant 8.000000e+00 : f32
      %23 = vector.broadcast %cst_17 : f32 to vector<1x128xf32>
      %24 = arith.divf %22, %23 : vector<1x128xf32>
      %c0_18 = arith.constant 0 : index
      %c0_19 = arith.constant 0 : index
      %25 = vector.load %arg5[%c0_18, %c0_19] : memref<1x128xf32, #tpu.memory_space<vmem>>, vector<1x128xf32>
      %cst_20 = arith.constant 1.000000e-03 : f32
      %26 = vector.broadcast %cst_20 : f32 to vector<1x128xf32>
      %27 = arith.addf %24, %26 : vector<1x128xf32>
      %28 = math.rsqrt %27 : vector<1x128xf32>
      %29 = arith.mulf %25, %28 : vector<1x128xf32>
      %30 = vector.broadcast %29 : vector<1x128xf32> to vector<8x128xf32>
      %31 = arith.mulf %19, %30 : vector<8x128xf32>
      %c0_21 = arith.constant 0 : index
      %c0_22 = arith.constant 0 : index
      %32 = vector.load %arg6[%c0_21, %c0_22] : memref<1x128xf32, #tpu.memory_space<vmem>>, vector<1x128xf32>
      %33 = vector.broadcast %32 : vector<1x128xf32> to vector<8x128xf32>
      %34 = arith.addf %31, %33 : vector<8x128xf32>
      %cst_23 = arith.constant 0.000000e+00 : f32
      %35 = vector.broadcast %cst_23 : f32 to vector<8x128xf32>
      %36 = arith.maximumf %34, %35 : vector<8x128xf32>
      %c0_24 = arith.constant 0 : index
      %c0_25 = arith.constant 0 : index
      %37 = vector.load %arg7[%c0_24, %c0_25] : memref<128x128xf32, #tpu.memory_space<vmem>>, vector<128x128xf32>
      %cst_26 = arith.constant dense<0.000000e+00> : vector<8x128xf32>
      %38 = tpu.matmul %36, %37, %cst_26 {dimension_numbers = #tpu.dot_dimension_numbers<[1], [0], [0], [1], [0, 0, 1, 1], [], []>} : vector<8x128xf32>, vector<128x128xf32>, vector<8x128xf32> -> vector<8x128xf32>
      %c0_27 = arith.constant 0 : index
      %c0_28 = arith.constant 0 : index
      %39 = vector.load %arg8[%c0_27, %c0_28] : memref<4x128xf32, #tpu.memory_space<vmem>>, vector<4x128xf32>
      %cst_29 = arith.constant dense<0.000000e+00> : vector<8x128xf32>
      %40 = tpu.matmul %12, %39, %cst_29 {dimension_numbers = #tpu.dot_dimension_numbers<[1], [0], [0], [1], [0, 0, 1, 1], [], []>} : vector<8x4xf32>, vector<4x128xf32>, vector<8x128xf32> -> vector<8x128xf32>
      %41 = arith.addf %38, %40 : vector<8x128xf32>
      %cst_30 = arith.constant dense<0.000000e+00> : vector<128xf32>
      %42 = vector.multi_reduction <add>, %41, %cst_30 [0] : vector<8x128xf32> to vector<128xf32>
      %43 = vector.shape_cast %42 : vector<128xf32> to vector<1x128xf32>
      %cst_31 = arith.constant 8.000000e+00 : f32
      %44 = vector.broadcast %cst_31 : f32 to vector<1x128xf32>
      %45 = arith.divf %43, %44 : vector<1x128xf32>
      %46 = vector.broadcast %45 : vector<1x128xf32> to vector<8x128xf32>
      %47 = arith.subf %41, %46 : vector<8x128xf32>
      %48 = arith.mulf %47, %47 : vector<8x128xf32>
      %cst_32 = arith.constant dense<0.000000e+00> : vector<128xf32>
      %49 = vector.multi_reduction <add>, %48, %cst_32 [0] : vector<8x128xf32> to vector<128xf32>
      %50 = vector.shape_cast %49 : vector<128xf32> to vector<1x128xf32>
      %cst_33 = arith.constant 8.000000e+00 : f32
      %51 = vector.broadcast %cst_33 : f32 to vector<1x128xf32>
      %52 = arith.divf %50, %51 : vector<1x128xf32>
      %c0_34 = arith.constant 0 : index
      %c0_35 = arith.constant 0 : index
      %53 = vector.load %arg9[%c0_34, %c0_35] : memref<1x128xf32, #tpu.memory_space<vmem>>, vector<1x128xf32>
      %cst_36 = arith.constant 1.000000e-03 : f32
      %54 = vector.broadcast %cst_36 : f32 to vector<1x128xf32>
      %55 = arith.addf %52, %54 : vector<1x128xf32>
      %56 = math.rsqrt %55 : vector<1x128xf32>
      %57 = arith.mulf %53, %56 : vector<1x128xf32>
      %58 = vector.broadcast %57 : vector<1x128xf32> to vector<8x128xf32>
      %59 = arith.mulf %47, %58 : vector<8x128xf32>
      %c0_37 = arith.constant 0 : index
      %c0_38 = arith.constant 0 : index
      %60 = vector.load %arg10[%c0_37, %c0_38] : memref<1x128xf32, #tpu.memory_space<vmem>>, vector<1x128xf32>
      %61 = vector.broadcast %60 : vector<1x128xf32> to vector<8x128xf32>
      %62 = arith.addf %59, %61 : vector<8x128xf32>
      %cst_39 = arith.constant 0.000000e+00 : f32
      %63 = vector.broadcast %cst_39 : f32 to vector<8x128xf32>
      %64 = arith.maximumf %62, %63 : vector<8x128xf32>
      %c0_40 = arith.constant 0 : index
      %c0_41 = arith.constant 0 : index
      %65 = vector.load %arg11[%c0_40, %c0_41] : memref<8x128xf32, #tpu.memory_space<vmem>>, vector<8x128xf32>
      tpu.vector_store %arg11[%c0_40, %c0_41], %64 {strides = array<i32>} : memref<8x128xf32, #tpu.memory_space<vmem>>, vector<8x128xf32>,
    } else {
    }
    return
  }
  func.func @transform_0(%arg0: i32) -> (i32, i32) {
    %c0_i32 = arith.constant 0 : i32
    %c0_i32_0 = arith.constant 0 : i32
    %c0_i32_1 = arith.constant 0 : i32
    return %c0_i32, %c0_i32_0 : i32, i32
  }
  func.func @transform_1(%arg0: i32) -> (i32, i32) {
    %c0_i32 = arith.constant 0 : i32
    %c0_i32_0 = arith.constant 0 : i32
    return %c0_i32, %arg0 : i32, i32
  }
  func.func @transform_2(%arg0: i32) -> (i32, i32) {
    %c0_i32 = arith.constant 0 : i32
    %c0_i32_0 = arith.constant 0 : i32
    return %arg0, %c0_i32 : i32, i32
  }
  func.func @transform_3(%arg0: i32) -> (i32, i32) {
    %c0_i32 = arith.constant 0 : i32
    %c0_i32_0 = arith.constant 0 : i32
    %c0_i32_1 = arith.constant 0 : i32
    return %c0_i32, %c0_i32_0 : i32, i32
  }
  func.func @transform_4(%arg0: i32) -> (i32, i32) {
    %c0_i32 = arith.constant 0 : i32
    %c0_i32_0 = arith.constant 0 : i32
    %c0_i32_1 = arith.constant 0 : i32
    return %c0_i32, %c0_i32_0 : i32, i32
  }
  func.func @transform_5(%arg0: i32) -> (i32, i32) {
    %c0_i32 = arith.constant 0 : i32
    %c0_i32_0 = arith.constant 0 : i32
    %c0_i32_1 = arith.constant 0 : i32
    return %c0_i32, %c0_i32_0 : i32, i32
  }
  func.func @transform_6(%arg0: i32) -> (i32, i32) {
    %c0_i32 = arith.constant 0 : i32
    %c0_i32_0 = arith.constant 0 : i32
    %c0_i32_1 = arith.constant 0 : i32
    return %c0_i32, %c0_i32_0 : i32, i32
  }
  func.func @transform_7(%arg0: i32) -> (i32, i32) {
    %c0_i32 = arith.constant 0 : i32
    %c0_i32_0 = arith.constant 0 : i32
    %c0_i32_1 = arith.constant 0 : i32
    return %c0_i32, %c0_i32_0 : i32, i32
  }
  func.func @transform_8(%arg0: i32) -> (i32, i32) {
    %c0_i32 = arith.constant 0 : i32
    %c0_i32_0 = arith.constant 0 : i32
    %c0_i32_1 = arith.constant 0 : i32
    return %c0_i32, %c0_i32_0 : i32, i32
  }
  func.func @transform_9(%arg0: i32) -> (i32, i32) {
    %c0_i32 = arith.constant 0 : i32
    %c0_i32_0 = arith.constant 0 : i32
    %c0_i32_1 = arith.constant 0 : i32
    return %c0_i32, %c0_i32_0 : i32, i32
  }
  func.func @transform_10(%arg0: i32) -> (i32, i32) {
    %c0_i32 = arith.constant 0 : i32
    %c0_i32_0 = arith.constant 0 : i32
    %c0_i32_1 = arith.constant 0 : i32
    return %c0_i32, %c0_i32_0 : i32, i32
  }
}

module attributes {stable_mosaic.version = 11 : i64} {
  func.func @kernel(%arg0: i32, %arg1: memref<8x4xf32, #tpu.memory_space<vmem>>, %arg2: memref<8x128xf32, #tpu.memory_space<vmem>>, %arg3: memref<128x128xf32, #tpu.memory_space<vmem>>, %arg4: memref<4x128xf32, #tpu.memory_space<vmem>>, %arg5: memref<1x128xf32, #tpu.memory_space<vmem>>, %arg6: memref<1x128xf32, #tpu.memory_space<vmem>>, %arg7: memref<128x128xf32, #tpu.memory_space<vmem>>, %arg8: memref<4x128xf32, #tpu.memory_space<vmem>>, %arg9: memref<1x128xf32, #tpu.memory_space<vmem>>, %arg10: memref<1x128xf32, #tpu.memory_space<vmem>>, %arg11: memref<8x128xf32, #tpu.memory_space<vmem>>, %arg12: memref<8x128xf32, #tpu.memory_space<vmem>>) attributes {dimension_semantics = [#tpu.dimension_semantics<arbitrary>], iteration_bounds = array<i64: 1>, scalar_prefetch = 0 : i64, scratch_operands = 1 : i64, tpu.core_type = #tpu.core_type<tc>, window_params = [{pipeline_mode = #tpu.pipeline_mode<synchronous>, transform_indices = @transform_0, window_bounds = array<i64: 8, 4>}, {transform_indices = @transform_1, window_bounds = array<i64: 8, 128>}, {transform_indices = @transform_2, window_bounds = array<i64: 128, 128>}, {pipeline_mode = #tpu.pipeline_mode<synchronous>, transform_indices = @transform_3, window_bounds = array<i64: 4, 128>}, {pipeline_mode = #tpu.pipeline_mode<synchronous>, transform_indices = @transform_4, window_bounds = array<i64: 1, 128>}, {pipeline_mode = #tpu.pipeline_mode<synchronous>, transform_indices = @transform_5, window_bounds = array<i64: 1, 128>}, {pipeline_mode = #tpu.pipeline_mode<synchronous>, transform_indices = @transform_6, window_bounds = array<i64: 128, 128>}, {pipeline_mode = #tpu.pipeline_mode<synchronous>, transform_indices = @transform_7, window_bounds = array<i64: 4, 128>}, {pipeline_mode = #tpu.pipeline_mode<synchronous>, transform_indices = @transform_8, window_bounds = array<i64: 1, 128>}, {pipeline_mode = #tpu.pipeline_mode<synchronous>, transform_indices = @transform_9, window_bounds = array<i64: 1, 128>}, {pipeline_mode = #tpu.pipeline_mode<synchronous>, transform_indices = @transform_10, window_bounds = array<i64: 8, 128>}]} {
    %c0_i32 = arith.constant 0 : i32
    %0 = arith.cmpi eq, %arg0, %c0_i32 : i32
    %1 = arith.extui %0 : i1 to i32
    %c0_i32_0 = arith.constant 0 : i32
    %2 = arith.cmpi ne, %1, %c0_i32_0 : i32
    scf.if %2 {
      %c0_10 = arith.constant 0 : index
      %c0_11 = arith.constant 0 : index
      %12 = vector.load %arg1[%c0_10, %c0_11] : memref<8x4xf32, #tpu.memory_space<vmem>>, vector<8x4xf32>
      %c0_12 = arith.constant 0 : index
      %c0_13 = arith.constant 0 : index
      %13 = vector.load %arg4[%c0_12, %c0_13] : memref<4x128xf32, #tpu.memory_space<vmem>>, vector<4x128xf32>
      %cst_14 = arith.constant dense<0.000000e+00> : vector<8x128xf32>
      %14 = tpu.matmul %12, %13, %cst_14 {dimension_numbers = #tpu.dot_dimension_numbers<[1], [0], [0], [1], [0, 0, 1, 1], [], []>} : vector<8x4xf32>, vector<4x128xf32>, vector<8x128xf32> -> vector<8x128xf32>
      %c0_15 = arith.constant 0 : index
      %c0_16 = arith.constant 0 : index
      %15 = vector.load %arg12[%c0_15, %c0_16] : memref<8x128xf32, #tpu.memory_space<vmem>>, vector<8x128xf32>
      tpu.vector_store %arg12[%c0_15, %c0_16], %14 {strides = array<i32>} : memref<8x128xf32, #tpu.memory_space<vmem>>, vector<8x128xf32>,
    } else {
    }
    %c0 = arith.constant 0 : index
    %c0_1 = arith.constant 0 : index
    %3 = vector.load %arg12[%c0, %c0_1] : memref<8x128xf32, #tpu.memory_space<vmem>>, vector<8x128xf32>
    %c0_2 = arith.constant 0 : index
    %c0_3 = arith.constant 0 : index
    %4 = vector.load %arg2[%c0_2, %c0_3] : memref<8x128xf32, #tpu.memory_space<vmem>>, vector<8x128xf32>
    %c0_4 = arith.constant 0 : index
    %c0_5 = arith.constant 0 : index
    %5 = vector.load %arg3[%c0_4, %c0_5] : memref<128x128xf32, #tpu.memory_space<vmem>>, vector<128x128xf32>
    %cst = arith.constant dense<0.000000e+00> : vector<8x128xf32>
    %6 = tpu.matmul %4, %5, %cst {dimension_numbers = #tpu.dot_dimension_numbers<[1], [0], [0], [1], [0, 0, 1, 1], [], []>} : vector<8x128xf32>, vector<128x128xf32>, vector<8x128xf32> -> vector<8x128xf32>
    %7 = arith.addf %3, %6 : vector<8x128xf32>
    %c0_6 = arith.constant 0 : index
    %c0_7 = arith.constant 0 : index
    %8 = vector.load %arg12[%c0_6, %c0_7] : memref<8x128xf32, #tpu.memory_space<vmem>>, vector<8x128xf32>
    tpu.vector_store %arg12[%c0_6, %c0_7], %7 {strides = array<i32>} : memref<8x128xf32, #tpu.memory_space<vmem>>, vector<8x128xf32>,
    %c0_i32_8 = arith.constant 0 : i32
    %9 = arith.cmpi eq, %arg0, %c0_i32_8 : i32
    %10 = arith.extui %9 : i1 to i32
    %c0_i32_9 = arith.constant 0 : i32
    %11 = arith.cmpi ne, %10, %c0_i32_9 : i32
    scf.if %11 {
      %c0_10 = arith.constant 0 : index
      %c0_11 = arith.constant 0 : index
      %12 = vector.load %arg1[%c0_10, %c0_11] : memref<8x4xf32, #tpu.memory_space<vmem>>, vector<8x4xf32>
      %c0_12 = arith.constant 0 : index
      %c0_13 = arith.constant 0 : index
      %13 = vector.load %arg12[%c0_12, %c0_13] : memref<8x128xf32, #tpu.memory_space<vmem>>, vector<8x128xf32>
      %cst_14 = arith.constant dense<0.000000e+00> : vector<128xf32>
      %14 = vector.multi_reduction <add>, %13, %cst_14 [0] : vector<8x128xf32> to vector<128xf32>
      %15 = vector.shape_cast %14 : vector<128xf32> to vector<1x128xf32>
      %cst_15 = arith.constant 8.000000e+00 : f32
      %16 = vector.broadcast %cst_15 : f32 to vector<1x128xf32>
      %17 = arith.divf %15, %16 : vector<1x128xf32>
      %18 = vector.broadcast %17 : vector<1x128xf32> to vector<8x128xf32>
      %19 = arith.subf %13, %18 : vector<8x128xf32>
      %20 = arith.mulf %19, %19 : vector<8x128xf32>
      %cst_16 = arith.constant dense<0.000000e+00> : vector<128xf32>
      %21 = vector.multi_reduction <add>, %20, %cst_16 [0] : vector<8x128xf32> to vector<128xf32>
      %22 = vector.shape_cast %21 : vector<128xf32> to vector<1x128xf32>
      %cst_17 = arith.constant 8.000000e+00 : f32
      %23 = vector.broadcast %cst_17 : f32 to vector<1x128xf32>
      %24 = arith.divf %22, %23 : vector<1x128xf32>
      %c0_18 = arith.constant 0 : index
      %c0_19 = arith.constant 0 : index
      %25 = vector.load %arg5[%c0_18, %c0_19] : memref<1x128xf32, #tpu.memory_space<vmem>>, vector<1x128xf32>
      %cst_20 = arith.constant 1.000000e-03 : f32
      %26 = vector.broadcast %cst_20 : f32 to vector<1x128xf32>
      %27 = arith.addf %24, %26 : vector<1x128xf32>
      %28 = math.rsqrt %27 : vector<1x128xf32>
      %29 = arith.mulf %25, %28 : vector<1x128xf32>
      %30 = vector.broadcast %29 : vector<1x128xf32> to vector<8x128xf32>
      %31 = arith.mulf %19, %30 : vector<8x128xf32>
      %c0_21 = arith.constant 0 : index
      %c0_22 = arith.constant 0 : index
      %32 = vector.load %arg6[%c0_21, %c0_22] : memref<1x128xf32, #tpu.memory_space<vmem>>, vector<1x128xf32>
      %33 = vector.broadcast %32 : vector<1x128xf32> to vector<8x128xf32>
      %34 = arith.addf %31, %33 : vector<8x128xf32>
      %cst_23 = arith.constant 0.000000e+00 : f32
      %35 = vector.broadcast %cst_23 : f32 to vector<8x128xf32>
      %36 = arith.maximumf %34, %35 : vector<8x128xf32>
      %c0_24 = arith.constant 0 : index
      %c0_25 = arith.constant 0 : index
      %37 = vector.load %arg7[%c0_24, %c0_25] : memref<128x128xf32, #tpu.memory_space<vmem>>, vector<128x128xf32>
      %cst_26 = arith.constant dense<0.000000e+00> : vector<8x128xf32>
      %38 = tpu.matmul %36, %37, %cst_26 {dimension_numbers = #tpu.dot_dimension_numbers<[1], [0], [0], [1], [0, 0, 1, 1], [], []>} : vector<8x128xf32>, vector<128x128xf32>, vector<8x128xf32> -> vector<8x128xf32>
      %c0_27 = arith.constant 0 : index
      %c0_28 = arith.constant 0 : index
      %39 = vector.load %arg8[%c0_27, %c0_28] : memref<4x128xf32, #tpu.memory_space<vmem>>, vector<4x128xf32>
      %cst_29 = arith.constant dense<0.000000e+00> : vector<8x128xf32>
      %40 = tpu.matmul %12, %39, %cst_29 {dimension_numbers = #tpu.dot_dimension_numbers<[1], [0], [0], [1], [0, 0, 1, 1], [], []>} : vector<8x4xf32>, vector<4x128xf32>, vector<8x128xf32> -> vector<8x128xf32>
      %41 = arith.addf %38, %40 : vector<8x128xf32>
      %cst_30 = arith.constant dense<0.000000e+00> : vector<128xf32>
      %42 = vector.multi_reduction <add>, %41, %cst_30 [0] : vector<8x128xf32> to vector<128xf32>
      %43 = vector.shape_cast %42 : vector<128xf32> to vector<1x128xf32>
      %cst_31 = arith.constant 8.000000e+00 : f32
      %44 = vector.broadcast %cst_31 : f32 to vector<1x128xf32>
      %45 = arith.divf %43, %44 : vector<1x128xf32>
      %46 = vector.broadcast %45 : vector<1x128xf32> to vector<8x128xf32>
      %47 = arith.subf %41, %46 : vector<8x128xf32>
      %48 = arith.mulf %47, %47 : vector<8x128xf32>
      %cst_32 = arith.constant dense<0.000000e+00> : vector<128xf32>
      %49 = vector.multi_reduction <add>, %48, %cst_32 [0] : vector<8x128xf32> to vector<128xf32>
      %50 = vector.shape_cast %49 : vector<128xf32> to vector<1x128xf32>
      %cst_33 = arith.constant 8.000000e+00 : f32
      %51 = vector.broadcast %cst_33 : f32 to vector<1x128xf32>
      %52 = arith.divf %50, %51 : vector<1x128xf32>
      %c0_34 = arith.constant 0 : index
      %c0_35 = arith.constant 0 : index
      %53 = vector.load %arg9[%c0_34, %c0_35] : memref<1x128xf32, #tpu.memory_space<vmem>>, vector<1x128xf32>
      %cst_36 = arith.constant 1.000000e-03 : f32
      %54 = vector.broadcast %cst_36 : f32 to vector<1x128xf32>
      %55 = arith.addf %52, %54 : vector<1x128xf32>
      %56 = math.rsqrt %55 : vector<1x128xf32>
      %57 = arith.mulf %53, %56 : vector<1x128xf32>
      %58 = vector.broadcast %57 : vector<1x128xf32> to vector<8x128xf32>
      %59 = arith.mulf %47, %58 : vector<8x128xf32>
      %c0_37 = arith.constant 0 : index
      %c0_38 = arith.constant 0 : index
      %60 = vector.load %arg10[%c0_37, %c0_38] : memref<1x128xf32, #tpu.memory_space<vmem>>, vector<1x128xf32>
      %61 = vector.broadcast %60 : vector<1x128xf32> to vector<8x128xf32>
      %62 = arith.addf %59, %61 : vector<8x128xf32>
      %cst_39 = arith.constant 0.000000e+00 : f32
      %63 = vector.broadcast %cst_39 : f32 to vector<8x128xf32>
      %64 = arith.maximumf %62, %63 : vector<8x128xf32>
      %c0_40 = arith.constant 0 : index
      %c0_41 = arith.constant 0 : index
      %65 = vector.load %arg11[%c0_40, %c0_41] : memref<8x128xf32, #tpu.memory_space<vmem>>, vector<8x128xf32>
      tpu.vector_store %arg11[%c0_40, %c0_41], %64 {strides = array<i32>} : memref<8x128xf32, #tpu.memory_space<vmem>>, vector<8x128xf32>,
    } else {
    }
    return
  }
  func.func @transform_0(%arg0: i32) -> (i32, i32) {
    %c0_i32 = arith.constant 0 : i32
    %c0_i32_0 = arith.constant 0 : i32
    %c0_i32_1 = arith.constant 0 : i32
    return %c0_i32, %c0_i32_0 : i32, i32
  }
  func.func @transform_1(%arg0: i32) -> (i32, i32) {
    %c0_i32 = arith.constant 0 : i32
    %c0_i32_0 = arith.constant 0 : i32
    return %c0_i32, %arg0 : i32, i32
  }
  func.func @transform_2(%arg0: i32) -> (i32, i32) {
    %c0_i32 = arith.constant 0 : i32
    %c0_i32_0 = arith.constant 0 : i32
    return %arg0, %c0_i32 : i32, i32
  }
  func.func @transform_3(%arg0: i32) -> (i32, i32) {
    %c0_i32 = arith.constant 0 : i32
    %c0_i32_0 = arith.constant 0 : i32
    %c0_i32_1 = arith.constant 0 : i32
    return %c0_i32, %c0_i32_0 : i32, i32
  }
  func.func @transform_4(%arg0: i32) -> (i32, i32) {
    %c0_i32 = arith.constant 0 : i32
    %c0_i32_0 = arith.constant 0 : i32
    %c0_i32_1 = arith.constant 0 : i32
    return %c0_i32, %c0_i32_0 : i32, i32
  }
  func.func @transform_5(%arg0: i32) -> (i32, i32) {
    %c0_i32 = arith.constant 0 : i32
    %c0_i32_0 = arith.constant 0 : i32
    %c0_i32_1 = arith.constant 0 : i32
    return %c0_i32, %c0_i32_0 : i32, i32
  }
  func.func @transform_6(%arg0: i32) -> (i32, i32) {
    %c0_i32 = arith.constant 0 : i32
    %c0_i32_0 = arith.constant 0 : i32
    %c0_i32_1 = arith.constant 0 : i32
    return %c0_i32, %c0_i32_0 : i32, i32
  }
  func.func @transform_7(%arg0: i32) -> (i32, i32) {
    %c0_i32 = arith.constant 0 : i32
    %c0_i32_0 = arith.constant 0 : i32
    %c0_i32_1 = arith.constant 0 : i32
    return %c0_i32, %c0_i32_0 : i32, i32
  }
  func.func @transform_8(%arg0: i32) -> (i32, i32) {
    %c0_i32 = arith.constant 0 : i32
    %c0_i32_0 = arith.constant 0 : i32
    %c0_i32_1 = arith.constant 0 : i32
    return %c0_i32, %c0_i32_0 : i32, i32
  }
  func.func @transform_9(%arg0: i32) -> (i32, i32) {
    %c0_i32 = arith.constant 0 : i32
    %c0_i32_0 = arith.constant 0 : i32
    %c0_i32_1 = arith.constant 0 : i32
    return %c0_i32, %c0_i32_0 : i32, i32
  }
  func.func @transform_10(%arg0: i32) -> (i32, i32) {
    %c0_i32 = arith.constant 0 : i32
    %c0_i32_0 = arith.constant 0 : i32
    %c0_i32_1 = arith.constant 0 : i32
    return %c0_i32, %c0_i32_0 : i32, i32
  }
}

</mosaic_0001>

<llo_original>
// kernel: tpu_custom_call.1
$region0: #{tpu_custom_call.1}
  #allocation0 [shape = 'u32[]', space=smem, size = 0x4, offset = 0x4, fixed_abs, tag = 'smem constant byte address 0x4 - core index']
  #allocation1 [shape = 'u32[144,128]{1,0:T(1,128)}', space=vmem, size = 0x12000, scoped, tag = 'internal scratch']
  #allocation2 [shape = 'f32[8,128]{1,0:T(8,128)}', space=vmem, size = 0x1000, scoped, tag = 'scratch operand']
  %s0 = inlined_call_operand.vmem [shape: f32[8,4], index: 0, kind: input, shape index: {}]
  %s1 = inlined_call_operand.vmem [shape: f32[8,128], index: 1, kind: input, shape index: {}]
  %s2 = inlined_call_operand.hbm [shape: f32[128,128], index: 2, kind: input, shape index: {}]
  %s3 = inlined_call_operand.vmem [shape: f32[4,128], index: 3, kind: input, shape index: {}]
  %s4 = inlined_call_operand.vmem [shape: f32[1,128], index: 4, kind: input, shape index: {}]
  %s5 = inlined_call_operand.vmem [shape: f32[1,128], index: 5, kind: input, shape index: {}]
  %s6 = inlined_call_operand.hbm [shape: f32[128,128], index: 6, kind: input, shape index: {}]
  %s7 = inlined_call_operand.vmem [shape: f32[4,128], index: 7, kind: input, shape index: {}]
  %s8 = inlined_call_operand.vmem [shape: f32[1,128], index: 8, kind: input, shape index: {}]
  %s9 = inlined_call_operand.vmem [shape: f32[1,128], index: 9, kind: input, shape index: {}]
  %s10 = inlined_call_operand.hbm [shape: f32[8,128], index: 10, kind: output, shape index: {}]
  %s11 = sld [smem:[#allocation0]]
  $region66: #{tpu_custom_call.1} parent=0
    _
  %s13 = ssub.s32 1, %s11
  %s14 = scalar_select 0, %s13, %s11
  $region1: #{tpu_custom_call.1} parent=0
    #allocation3 [shape = 'u8[65536]{0}', space=vmem, size = 0x10000, scoped, tag = 'input window, operand 2, single buffered']
    #allocation4 [shape = 's32[1]{0}', space=sflag, size = 0x4, scoped, tag = 'scoped memory for tpu_custom_call.1']
    #allocation5 [shape = 's32[1]{0}', space=sflag, size = 0x4, scoped, tag = 'scoped memory for tpu_custom_call.1']
    #allocation6 [shape = 'u8[65536]{0}', space=vmem, size = 0x10000, scoped, tag = 'input window, operand 6, single buffered']
    #allocation7 [shape = 's32[1]{0}', space=sflag, size = 0x4, scoped, tag = 'scoped memory for tpu_custom_call.1']
    #allocation8 [shape = 'u8[4096]{0}', space=vmem, size = 0x1000, scoped, tag = 'output window, operand 0, single buffered']
    %15 = vsyncpa [#allocation4], 0
    %16 = vsyncpa [#allocation7], 0
    %17 = vsyncpa [#allocation5], 0
    // Predicated region
    $region2: #{tpu_custom_call.1} parent=1 // pred_check
      _
    $region3: #{tpu_custom_call.1} parent=1 // pred_check_branch
      %19 = sbr.rel (0) target = $region5
    $region4: #{tpu_custom_call.1} parent=1 // pred_region
      _
    $region5: #{tpu_custom_call.1} parent=1 // pred_fallthru
      _
    // Predicated region
    $region6: #{tpu_custom_call.1} parent=1 // pred_check
      _
    $region7: #{tpu_custom_call.1} parent=1 // pred_check_branch
      %21 = sbr.rel (0) target = $region9
    $region8: #{tpu_custom_call.1} parent=1 // pred_region
      _
    $region9: #{tpu_custom_call.1} parent=1 // pred_fallthru
      _
    // Predicated region
    $region10: #{tpu_custom_call.1} parent=1 // pred_check
      _
    $region11: #{tpu_custom_call.1} parent=1 // pred_check_branch
      %23 = sbr.rel (0) target = $region13
    $region12: #{tpu_custom_call.1} parent=1 // pred_region
      %s25 = ssub.s32 2048, 2048
      %26 = vsyncadd [#allocation4], %s25
      %s27 = sshll.u32 [#allocation3], 4
      %s28 = int_to_ptr.vmem [resolvable:$true] %s27
      %33 = dma.hbm_to_vmem [thread:$0]  %s2, 2048, %s28, [#allocation4], 128, 128, 8
    $region13: #{tpu_custom_call.1} parent=1 // pred_fallthru
      _
    // Predicated region
    $region14: #{tpu_custom_call.1} parent=1 // pred_check
      _
    $region15: #{tpu_custom_call.1} parent=1 // pred_check_branch
      %35 = sbr.rel (0) target = $region17
    $region16: #{tpu_custom_call.1} parent=1 // pred_region
      _
    $region17: #{tpu_custom_call.1} parent=1 // pred_fallthru
      _
    // Predicated region
    $region18: #{tpu_custom_call.1} parent=1 // pred_check
      _
    $region19: #{tpu_custom_call.1} parent=1 // pred_check_branch
      %37 = sbr.rel (0) target = $region21
    $region20: #{tpu_custom_call.1} parent=1 // pred_region
      _
    $region21: #{tpu_custom_call.1} parent=1 // pred_fallthru
      _
    // Predicated region
    $region22: #{tpu_custom_call.1} parent=1 // pred_check
      _
    $region23: #{tpu_custom_call.1} parent=1 // pred_check_branch
      %39 = sbr.rel (0) target = $region25
    $region24: #{tpu_custom_call.1} parent=1 // pred_region
      _
    $region25: #{tpu_custom_call.1} parent=1 // pred_fallthru
      _
    // Predicated region
    $region26: #{tpu_custom_call.1} parent=1 // pred_check
      _
    $region27: #{tpu_custom_call.1} parent=1 // pred_check_branch
      %41 = sbr.rel (0) target = $region29
    $region28: #{tpu_custom_call.1} parent=1 // pred_region
      %s43 = ssub.s32 2048, 2048
      %44 = vsyncadd [#allocation7], %s43
      %s45 = sshll.u32 [#allocation6], 4
      %s46 = int_to_ptr.vmem [resolvable:$true] %s45
      %51 = dma.hbm_to_vmem [thread:$0]  %s6, 2048, %s46, [#allocation7], 128, 128, 8
    $region29: #{tpu_custom_call.1} parent=1 // pred_fallthru
      _
    // Predicated region
    $region30: #{tpu_custom_call.1} parent=1 // pred_check
      _
    $region31: #{tpu_custom_call.1} parent=1 // pred_check_branch
      %53 = sbr.rel (0) target = $region33
    $region32: #{tpu_custom_call.1} parent=1 // pred_region
      _
    $region33: #{tpu_custom_call.1} parent=1 // pred_fallthru
      _
    // Predicated region
    $region34: #{tpu_custom_call.1} parent=1 // pred_check
      _
    $region35: #{tpu_custom_call.1} parent=1 // pred_check_branch
      %55 = sbr.rel (0) target = $region37
    $region36: #{tpu_custom_call.1} parent=1 // pred_region
      _
    $region37: #{tpu_custom_call.1} parent=1 // pred_fallthru
      _
    // Predicated region
    $region38: #{tpu_custom_call.1} parent=1 // pred_check
      _
    $region39: #{tpu_custom_call.1} parent=1 // pred_check_branch
      %57 = sbr.rel (0) target = $region41
    $region40: #{tpu_custom_call.1} parent=1 // pred_region
      _
    $region41: #{tpu_custom_call.1} parent=1 // pred_fallthru
      _
    // Predicated region
    $region42: #{tpu_custom_call.1} parent=1 // pred_check
      _
    $region43: #{tpu_custom_call.1} parent=1 // pred_check_branch
      %59 = sbr.rel (0) target = $region45
    $region44: #{tpu_custom_call.1} parent=1 // pred_region
      %60 = dma.done [#allocation4], 2048
    $region45: #{tpu_custom_call.1} parent=1 // pred_fallthru
      _
    // Predicated region
    $region46: #{tpu_custom_call.1} parent=1 // pred_check
      _
    $region47: #{tpu_custom_call.1} parent=1 // pred_check_branch
      %62 = sbr.rel (0) target = $region49
    $region48: #{tpu_custom_call.1} parent=1 // pred_region
      %63 = dma.done [#allocation7], 2048
    $region49: #{tpu_custom_call.1} parent=1 // pred_fallthru
      _
    %p64 = scmp.eq.s32.totalorder 0, 0
    // Predicated region
    $region50: #{tpu_custom_call.1} parent=1 // pred_check
      %p65 = pneg %p64
    $region51: #{tpu_custom_call.1} parent=1 // pred_check_branch
      %67 = sbr.rel (%p65) target = $region53
    $region52: #{tpu_custom_call.1} parent=1 // pred_region
      %v68 = vld [vmem:[%s0] sm:$0xff]
      %v69 = vld [vmem:[%s3] sm:$0xf]
      %vm70 = vcmask 31744
      %v72 = vsel %vm70, %v68, 0
      %vm74 = vcmask 1043456
      %v76 = vsel %vm74, %v69, 0
      %78 = vmatprep.subr.mxu0 0.0
      %79 = vmatpush1.msra.mxu0 %v76
      %80 = vmatprep.subr.mxu0 0.0
      %81 = vmatpush1.msra.mxu0 0.0
      %82 = vmatprep.subr.mxu0 0.0
      %83 = vmatpush1.msra.mxu0 0.0
      %84 = vmatprep.subr.mxu0 0.0
      %85 = vmatpush1.msra.mxu0 0.0
      %86 = vmatprep.subr.mxu0 0.0
      %87 = vmatpush1.msra.mxu0 0.0
      %88 = vmatprep.subr.mxu0 0.0
      %89 = vmatpush1.msra.mxu0 0.0
      %90 = vmatprep.subr.mxu0 0.0
      %91 = vmatpush1.msra.mxu0 0.0
      %92 = vmatprep.subr.mxu0 0.0
      %93 = vmatpush1.msra.mxu0 0.0
      %94 = vmatprep.subr.mxu0 0.0
      %95 = vmatpush1.msra.mxu0 0.0
      %96 = vmatprep.subr.mxu0 0.0
      %97 = vmatpush1.msra.mxu0 0.0
      %98 = vmatprep.subr.mxu0 0.0
      %99 = vmatpush1.msra.mxu0 0.0
      %100 = vmatprep.subr.mxu0 0.0
      %101 = vmatpush1.msra.mxu0 0.0
      %102 = vmatprep.subr.mxu0 0.0
      %103 = vmatpush1.msra.mxu0 0.0
      %104 = vmatprep.subr.mxu0 0.0
      %105 = vmatpush1.msra.mxu0 0.0
      %106 = vmatprep.subr.mxu0 0.0
      %107 = vmatpush1.msra.mxu0 0.0
      %108 = vmatprep.subr.mxu0 0.0
      %109 = vmatpush1.msra.mxu0 0.0
      %110 = vmatprep.subr.mxu0 0.0
      %111 = vmatpush1.msra.mxu0 0.0
      %112 = vmatprep.subr.mxu0 0.0
      %113 = vmatpush1.msra.mxu0 0.0
      %114 = vmatprep.subr.mxu0 0.0
      %115 = vmatpush1.msra.mxu0 0.0
      %116 = vmatprep.subr.mxu0 0.0
      %117 = vmatpush1.msra.mxu0 0.0
      %118 = vmatprep.subr.mxu0 0.0
      %119 = vmatpush1.msra.mxu0 0.0
      %120 = vmatprep.subr.mxu0 0.0
      %121 = vmatpush1.msra.mxu0 0.0
      %122 = vmatprep.subr.mxu0 0.0
      %123 = vmatpush1.msra.mxu0 0.0
      %124 = vmatprep.subr.mxu0 0.0
      %125 = vmatpush1.msra.mxu0 0.0
      %126 = vmatprep.subr.mxu0 0.0
      %127 = vmatpush1.msra.mxu0 0.0
      %128 = vmatprep.subr.mxu0 0.0
      %129 = vmatpush1.msra.mxu0 0.0
      %130 = vmatprep.subr.mxu0 0.0
      %131 = vmatpush1.msra.mxu0 0.0
      %132 = vmatprep.subr.mxu0 0.0
      %133 = vmatpush1.msra.mxu0 0.0
      %134 = vmatprep.subr.mxu0 0.0
      %135 = vmatpush1.msra.mxu0 0.0
      %136 = vmatprep.subr.mxu0 0.0
      %137 = vmatpush1.msra.mxu0 0.0
      %138 = vmatprep.subr.mxu0 0.0
      %139 = vmatpush1.msra.mxu0 0.0
      %140 = vmatprep.subr.mxu0 0.0
      %141 = vmatpush1.msra.mxu0 0.0
      %142 = vmatprep.mubr.f32.mxu0 0.0
      %143 = vmatmul.mubr.f32.gmra.mrb[0].mxu0 %v72
      %v144 = vpop.f32.mrb[0].mxu0
      %v145 = vadd.f32 0.0, %v144
      %v146 = vpop.f32.mrb[0].mxu0
      %147 = vdwg.mxu0
      %148 = vst [vmem:[#allocation2] sm:$0xff] %v145
    $region53: #{tpu_custom_call.1} parent=1 // pred_fallthru
      _
    %v149 = vld [vmem:[#allocation2] sm:$0xff]
    %v150 = vld [vmem:[%s1] sm:$0xff]
    %v151 = vld [vmem:[#allocation3] sm:$0xff]
    %v152 = vld [vmem:[#allocation3 + $0x8] sm:$0xff]
    %v153 = vld [vmem:[#allocation3 + $0x10] sm:$0xff]
    %v154 = vld [vmem:[#allocation3 + $0x18] sm:$0xff]
    %v155 = vld [vmem:[#allocation3 + $0x20] sm:$0xff]
    %v156 = vld [vmem:[#allocation3 + $0x28] sm:$0xff]
    %v157 = vld [vmem:[#allocation3 + $0x30] sm:$0xff]
    %v158 = vld [vmem:[#allocation3 + $0x38] sm:$0xff]
    %v159 = vld [vmem:[#allocation3 + $0x40] sm:$0xff]
    %v160 = vld [vmem:[#allocation3 + $0x48] sm:$0xff]
    %v161 = vld [vmem:[#allocation3 + $0x50] sm:$0xff]
    %v162 = vld [vmem:[#allocation3 + $0x58] sm:$0xff]
    %v163 = vld [vmem:[#allocation3 + $0x60] sm:$0xff]
    %v164 = vld [vmem:[#allocation3 + $0x68] sm:$0xff]
    %v165 = vld [vmem:[#allocation3 + $0x70] sm:$0xff]
    %v166 = vld [vmem:[#allocation3 + $0x78] sm:$0xff]
    %167 = vmatprep.subr.mxu0 0.0
    %168 = vmatpush1.msra.mxu0 %v151
    %169 = vmatprep.subr.mxu0 0.0
    %170 = vmatpush1.msra.mxu0 %v152
    %171 = vmatprep.subr.mxu0 0.0
    %172 = vmatpush1.msra.mxu0 %v153
    %173 = vmatprep.subr.mxu0 0.0
    %174 = vmatpush1.msra.mxu0 %v154
    %175 = vmatprep.subr.mxu0 0.0
    %176 = vmatpush1.msra.mxu0 %v155
    %177 = vmatprep.subr.mxu0 0.0
    %178 = vmatpush1.msra.mxu0 %v156
    %179 = vmatprep.subr.mxu0 0.0
    %180 = vmatpush1.msra.mxu0 %v157
    %181 = vmatprep.subr.mxu0 0.0
    %182 = vmatpush1.msra.mxu0 %v158
    %183 = vmatprep.subr.mxu0 0.0
    %184 = vmatpush1.msra.mxu0 %v159
    %185 = vmatprep.subr.mxu0 0.0
    %186 = vmatpush1.msra.mxu0 %v160
    %187 = vmatprep.subr.mxu0 0.0
    %188 = vmatpush1.msra.mxu0 %v161
    %189 = vmatprep.subr.mxu0 0.0
    %190 = vmatpush1.msra.mxu0 %v162
    %191 = vmatprep.subr.mxu0 0.0
    %192 = vmatpush1.msra.mxu0 %v163
    %193 = vmatprep.subr.mxu0 0.0
    %194 = vmatpush1.msra.mxu0 %v164
    %195 = vmatprep.subr.mxu0 0.0
    %196 = vmatpush1.msra.mxu0 %v165
    %197 = vmatprep.subr.mxu0 0.0
    %198 = vmatpush1.msra.mxu0 %v166
    %199 = vmatprep.subr.mxu0 0.0
    %200 = vmatpush1.msra.mxu0 0.0
    %201 = vmatprep.subr.mxu0 0.0
    %202 = vmatpush1.msra.mxu0 0.0
    %203 = vmatprep.subr.mxu0 0.0
    %204 = vmatpush1.msra.mxu0 0.0
    %205 = vmatprep.subr.mxu0 0.0
    %206 = vmatpush1.msra.mxu0 0.0
    %207 = vmatprep.subr.mxu0 0.0
    %208 = vmatpush1.msra.mxu0 0.0
    %209 = vmatprep.subr.mxu0 0.0
    %210 = vmatpush1.msra.mxu0 0.0
    %211 = vmatprep.subr.mxu0 0.0
    %212 = vmatpush1.msra.mxu0 0.0
    %213 = vmatprep.subr.mxu0 0.0
    %214 = vmatpush1.msra.mxu0 0.0
    %215 = vmatprep.subr.mxu0 0.0
    %216 = vmatpush1.msra.mxu0 0.0
    %217 = vmatprep.subr.mxu0 0.0
    %218 = vmatpush1.msra.mxu0 0.0
    %219 = vmatprep.subr.mxu0 0.0
    %220 = vmatpush1.msra.mxu0 0.0
    %221 = vmatprep.subr.mxu0 0.0
    %222 = vmatpush1.msra.mxu0 0.0
    %223 = vmatprep.subr.mxu0 0.0
    %224 = vmatpush1.msra.mxu0 0.0
    %225 = vmatprep.subr.mxu0 0.0
    %226 = vmatpush1.msra.mxu0 0.0
    %227 = vmatprep.subr.mxu0 0.0
    %228 = vmatpush1.msra.mxu0 0.0
    %229 = vmatprep.subr.mxu0 0.0
    %230 = vmatpush1.msra.mxu0 0.0
    %231 = vmatprep.mubr.f32.mxu0 0.0
    %232 = vmatmul.mubr.f32.gmra.mrb[0].mxu0 %v150
    %v233 = vpop.f32.mrb[0].mxu0
    %v234 = vadd.f32 0.0, %v233
    %v235 = vpop.f32.mrb[0].mxu0
    %236 = vdwg.mxu0
    %v237 = vadd.f32 %v149, %v234
    %238 = vst [vmem:[#allocation2] sm:$0xff] %v237
    // Predicated region
    $region54: #{tpu_custom_call.1} parent=1 // pred_check
      %p239 = pneg %p64
    $region55: #{tpu_custom_call.1} parent=1 // pred_check_branch
      %241 = sbr.rel (%p239) target = $region57
    $region56: #{tpu_custom_call.1} parent=1 // pred_region
      %v242 = vld [vmem:[%s0] sm:$0xff]
      %v243 = vld [vmem:[#allocation2] sm:$0xff]
      %v244 = vrot.slane %v243, 4
      %v245 = vadd.f32 %v243, %v244
      %v246 = vrot.slane %v245, 2
      %v247 = vadd.f32 %v245, %v246
      %v248 = vrot.slane %v247, 1
      %v249 = vadd.f32 %v247, %v248
      %v250 = vrcp.pop 8.0
      %v251 = vmul.f32 %v249, %v250
      %v252 = vsub.f32 %v243, %v251
      %v253 = vmul.f32 %v252, %v252
      %v254 = vrot.slane %v253, 4
      %v255 = vadd.f32 %v253, %v254
      %v256 = vrot.slane %v255, 2
      %v257 = vadd.f32 %v255, %v256
      %v258 = vrot.slane %v257, 1
      %v259 = vadd.f32 %v257, %v258
      %v260 = vmul.f32 %v259, %v250
      %v261 = vld [vmem:[%s4] sm:$0x1]
      %v262 = vadd.f32 %v260, 0.001
      %v263 = vrsqrt.pop %v262
      %v264 = vmul.f32 %v261, %v263
      %v266 = vlaneseq
      %v267 = vshrl.u32 %v266, 7
      %v268 = vsub.s32 0, %v267
      %v269 = vrot.slane %v264, %v268
      %v271 = vmul.f32 %v252, %v269
      %v272 = vld [vmem:[%s5] sm:$0x1]
      %v274 = vlaneseq
      %v275 = vshrl.u32 %v274, 7
      %v276 = vsub.s32 0, %v275
      %v277 = vrot.slane %v272, %v276
      %v279 = vadd.f32 %v271, %v277
      %v280 = vmax.f32 %v279, 0.0
      %v281 = vld [vmem:[#allocation6] sm:$0xff]
      %v282 = vld [vmem:[#allocation6 + $0x8] sm:$0xff]
      %v283 = vld [vmem:[#allocation6 + $0x10] sm:$0xff]
      %v284 = vld [vmem:[#allocation6 + $0x18] sm:$0xff]
      %v285 = vld [vmem:[#allocation6 + $0x20] sm:$0xff]
      %v286 = vld [vmem:[#allocation6 + $0x28] sm:$0xff]
      %v287 = vld [vmem:[#allocation6 + $0x30] sm:$0xff]
      %v288 = vld [vmem:[#allocation6 + $0x38] sm:$0xff]
      %v289 = vld [vmem:[#allocation6 + $0x40] sm:$0xff]
      %v290 = vld [vmem:[#allocation6 + $0x48] sm:$0xff]
      %v291 = vld [vmem:[#allocation6 + $0x50] sm:$0xff]
      %v292 = vld [vmem:[#allocation6 + $0x58] sm:$0xff]
      %v293 = vld [vmem:[#allocation6 + $0x60] sm:$0xff]
      %v294 = vld [vmem:[#allocation6 + $0x68] sm:$0xff]
      %v295 = vld [vmem:[#allocation6 + $0x70] sm:$0xff]
      %v296 = vld [vmem:[#allocation6 + $0x78] sm:$0xff]
      %v297 = vld [vmem:[%s7] sm:$0xf]
      %vm298 = vcmask 31744
      %v300 = vsel %vm298, %v242, 0
      %vm302 = vcmask 1043456
      %v304 = vsel %vm302, %v297, 0
      %306 = vmatprep.subr.mxu0 0.0
      %307 = vmatpush1.msra.mxu0 %v304
      %308 = vmatprep.subr.mxu0 0.0
      %309 = vmatpush1.msra.mxu0 0.0
      %310 = vmatprep.subr.mxu0 0.0
      %311 = vmatpush1.msra.mxu0 0.0
      %312 = vmatprep.subr.mxu0 0.0
      %313 = vmatpush1.msra.mxu0 0.0
      %314 = vmatprep.subr.mxu0 0.0
      %315 = vmatpush1.msra.mxu0 0.0
      %316 = vmatprep.subr.mxu0 0.0
      %317 = vmatpush1.msra.mxu0 0.0
      %318 = vmatprep.subr.mxu0 0.0
      %319 = vmatpush1.msra.mxu0 0.0
      %320 = vmatprep.subr.mxu0 0.0
      %321 = vmatpush1.msra.mxu0 0.0
      %322 = vmatprep.subr.mxu0 0.0
      %323 = vmatpush1.msra.mxu0 0.0
      %324 = vmatprep.subr.mxu0 0.0
      %325 = vmatpush1.msra.mxu0 0.0
      %326 = vmatprep.subr.mxu0 0.0
      %327 = vmatpush1.msra.mxu0 0.0
      %328 = vmatprep.subr.mxu0 0.0
      %329 = vmatpush1.msra.mxu0 0.0
      %330 = vmatprep.subr.mxu0 0.0
      %331 = vmatpush1.msra.mxu0 0.0
      %332 = vmatprep.subr.mxu0 0.0
      %333 = vmatpush1.msra.mxu0 0.0
      %334 = vmatprep.subr.mxu0 0.0
      %335 = vmatpush1.msra.mxu0 0.0
      %336 = vmatprep.subr.mxu0 0.0
      %337 = vmatpush1.msra.mxu0 0.0
      %338 = vmatprep.subr.mxu0 0.0
      %339 = vmatpush1.msra.mxu0 0.0
      %340 = vmatprep.subr.mxu0 0.0
      %341 = vmatpush1.msra.mxu0 0.0
      %342 = vmatprep.subr.mxu0 0.0
      %343 = vmatpush1.msra.mxu0 0.0
      %344 = vmatprep.subr.mxu0 0.0
      %345 = vmatpush1.msra.mxu0 0.0
      %346 = vmatprep.subr.mxu0 0.0
      %347 = vmatpush1.msra.mxu0 0.0
      %348 = vmatprep.subr.mxu0 0.0
      %349 = vmatpush1.msra.mxu0 0.0
      %350 = vmatprep.subr.mxu0 0.0
      %351 = vmatpush1.msra.mxu0 0.0
      %352 = vmatprep.subr.mxu0 0.0
      %353 = vmatpush1.msra.mxu0 0.0
      %354 = vmatprep.subr.mxu0 0.0
      %355 = vmatpush1.msra.mxu0 0.0
      %356 = vmatprep.subr.mxu0 0.0
      %357 = vmatpush1.msra.mxu0 0.0
      %358 = vmatprep.subr.mxu0 0.0
      %359 = vmatpush1.msra.mxu0 0.0
      %360 = vmatprep.subr.mxu0 0.0
      %361 = vmatpush1.msra.mxu0 0.0
      %362 = vmatprep.subr.mxu0 0.0
      %363 = vmatpush1.msra.mxu0 0.0
      %364 = vmatprep.subr.mxu0 0.0
      %365 = vmatpush1.msra.mxu0 0.0
      %366 = vmatprep.subr.mxu0 0.0
      %367 = vmatpush1.msra.mxu0 0.0
      %368 = vmatprep.subr.mxu0 0.0
      %369 = vmatpush1.msra.mxu0 0.0
      %370 = vmatprep.mubr.f32.mxu0 0.0
      %371 = vmatmul.mubr.f32.gmra.mrb[0].mxu0 %v300
      %v372 = vpop.f32.mrb[0].mxu0
      %v373 = vadd.f32 0.0, %v372
      %v374 = vpop.f32.mrb[0].mxu0
      %375 = vdwg.mxu0
      %376 = vmatprep.subr.mxu0 0.0
      %377 = vmatpush1.msra.mxu0 %v281
      %378 = vmatprep.subr.mxu0 0.0
      %379 = vmatpush1.msra.mxu0 %v282
      %380 = vmatprep.subr.mxu0 0.0
      %381 = vmatpush1.msra.mxu0 %v283
      %382 = vmatprep.subr.mxu0 0.0
      %383 = vmatpush1.msra.mxu0 %v284
      %384 = vmatprep.subr.mxu0 0.0
      %385 = vmatpush1.msra.mxu0 %v285
      %386 = vmatprep.subr.mxu0 0.0
      %387 = vmatpush1.msra.mxu0 %v286
      %388 = vmatprep.subr.mxu0 0.0
      %389 = vmatpush1.msra.mxu0 %v287
      %390 = vmatprep.subr.mxu0 0.0
      %391 = vmatpush1.msra.mxu0 %v288
      %392 = vmatprep.subr.mxu0 0.0
      %393 = vmatpush1.msra.mxu0 %v289
      %394 = vmatprep.subr.mxu0 0.0
      %395 = vmatpush1.msra.mxu0 %v290
      %396 = vmatprep.subr.mxu0 0.0
      %397 = vmatpush1.msra.mxu0 %v291
      %398 = vmatprep.subr.mxu0 0.0
      %399 = vmatpush1.msra.mxu0 %v292
      %400 = vmatprep.subr.mxu0 0.0
      %401 = vmatpush1.msra.mxu0 %v293
      %402 = vmatprep.subr.mxu0 0.0
      %403 = vmatpush1.msra.mxu0 %v294
      %404 = vmatprep.subr.mxu0 0.0
      %405 = vmatpush1.msra.mxu0 %v295
      %406 = vmatprep.subr.mxu0 0.0
      %407 = vmatpush1.msra.mxu0 %v296
      %408 = vmatprep.subr.mxu0 0.0
      %409 = vmatpush1.msra.mxu0 0.0
      %410 = vmatprep.subr.mxu0 0.0
      %411 = vmatpush1.msra.mxu0 0.0
      %412 = vmatprep.subr.mxu0 0.0
      %413 = vmatpush1.msra.mxu0 0.0
      %414 = vmatprep.subr.mxu0 0.0
      %415 = vmatpush1.msra.mxu0 0.0
      %416 = vmatprep.subr.mxu0 0.0
      %417 = vmatpush1.msra.mxu0 0.0
      %418 = vmatprep.subr.mxu0 0.0
      %419 = vmatpush1.msra.mxu0 0.0
      %420 = vmatprep.subr.mxu0 0.0
      %421 = vmatpush1.msra.mxu0 0.0
      %422 = vmatprep.subr.mxu0 0.0
      %423 = vmatpush1.msra.mxu0 0.0
      %424 = vmatprep.subr.mxu0 0.0
      %425 = vmatpush1.msra.mxu0 0.0
      %426 = vmatprep.subr.mxu0 0.0
      %427 = vmatpush1.msra.mxu0 0.0
      %428 = vmatprep.subr.mxu0 0.0
      %429 = vmatpush1.msra.mxu0 0.0
      %430 = vmatprep.subr.mxu0 0.0
      %431 = vmatpush1.msra.mxu0 0.0
      %432 = vmatprep.subr.mxu0 0.0
      %433 = vmatpush1.msra.mxu0 0.0
      %434 = vmatprep.subr.mxu0 0.0
      %435 = vmatpush1.msra.mxu0 0.0
      %436 = vmatprep.subr.mxu0 0.0
      %437 = vmatpush1.msra.mxu0 0.0
      %438 = vmatprep.subr.mxu0 0.0
      %439 = vmatpush1.msra.mxu0 0.0
      %440 = vmatprep.mubr.f32.mxu0 0.0
      %441 = vmatmul.mubr.f32.gmra.mrb[0].mxu0 %v280
      %v442 = vpop.f32.mrb[0].mxu0
      %v443 = vadd.f32 %v373, %v442
      %v444 = vpop.f32.mrb[0].mxu0
      %445 = vdwg.mxu0
      %v446 = vrot.slane %v443, 4
      %v447 = vadd.f32 %v443, %v446
      %v448 = vrot.slane %v447, 2
      %v449 = vadd.f32 %v447, %v448
      %v450 = vrot.slane %v449, 1
      %v451 = vadd.f32 %v449, %v450
      %v452 = vmul.f32 %v451, %v250
      %v453 = vsub.f32 %v443, %v452
      %v454 = vmul.f32 %v453, %v453
      %v455 = vrot.slane %v454, 4
      %v456 = vadd.f32 %v454, %v455
      %v457 = vrot.slane %v456, 2
      %v458 = vadd.f32 %v456, %v457
      %v459 = vrot.slane %v458, 1
      %v460 = vadd.f32 %v458, %v459
      %v461 = vmul.f32 %v460, %v250
      %v462 = vld [vmem:[%s8] sm:$0x1]
      %v463 = vadd.f32 %v461, 0.001
      %v464 = vrsqrt.pop %v463
      %v465 = vmul.f32 %v462, %v464
      %v467 = vlaneseq
      %v468 = vshrl.u32 %v467, 7
      %v469 = vsub.s32 0, %v468
      %v470 = vrot.slane %v465, %v469
      %v472 = vmul.f32 %v453, %v470
      %v473 = vld [vmem:[%s9] sm:$0x1]
      %v475 = vlaneseq
      %v476 = vshrl.u32 %v475, 7
      %v477 = vsub.s32 0, %v476
      %v478 = vrot.slane %v473, %v477
      %v480 = vadd.f32 %v472, %v478
      %v481 = vmax.f32 %v480, 0.0
      %482 = vst [vmem:[#allocation8] sm:$0xff] %v481
    $region57: #{tpu_custom_call.1} parent=1 // pred_fallthru
      _
    // Predicated region
    $region58: #{tpu_custom_call.1} parent=1 // pred_check
      _
    $region59: #{tpu_custom_call.1} parent=1 // pred_check_branch
      %484 = sbr.rel (0) target = $region61
    $region60: #{tpu_custom_call.1} parent=1 // pred_region
      %s486 = ssub.s32 128, 128
      %487 = vsyncadd [#allocation5], %s486
      %s489 = sshll.u32 [#allocation8], 4
      %s490 = int_to_ptr.vmem [resolvable:$true] %s489
      %492 = dma.vmem_to_hbm [thread:$0]  %s490, 128, %s10, [#allocation5]
    $region61: #{tpu_custom_call.1} parent=1 // pred_fallthru
      _
    // Predicated region
    $region62: #{tpu_custom_call.1} parent=1 // pred_check
      _
    $region63: #{tpu_custom_call.1} parent=1 // pred_check_branch
      %494 = sbr.rel (0) target = $region65
    $region64: #{tpu_custom_call.1} parent=1 // pred_region
      %495 = dma.done [#allocation5], 128
    $region65: #{tpu_custom_call.1} parent=1 // pred_fallthru
      _
    %496 = vsyncpa [#allocation4], 1
    %497 = vsyncpa [#allocation7], 1
    %498 = vsyncpa [#allocation5], 1

// kernel: tpu_custom_call.1
$region0: #{tpu_custom_call.1}
  #allocation0 [shape = 'u32[]', space=smem, size = 0x4, offset = 0x4, fixed_abs, tag = 'smem constant byte address 0x4 - core index']
  #allocation1 [shape = 'u32[144,128]{1,0:T(1,128)}', space=vmem, size = 0x12000, scoped, tag = 'internal scratch']
  #allocation2 [shape = 'f32[8,128]{1,0:T(8,128)}', space=vmem, size = 0x1000, scoped, tag = 'scratch operand']
  %s0 = inlined_call_operand.vmem [shape: f32[8,4], index: 0, kind: input, shape index: {}]
  %s1 = inlined_call_operand.vmem [shape: f32[8,128], index: 1, kind: input, shape index: {}]
  %s2 = inlined_call_operand.hbm [shape: f32[128,128], index: 2, kind: input, shape index: {}]
  %s3 = inlined_call_operand.vmem [shape: f32[4,128], index: 3, kind: input, shape index: {}]
  %s4 = inlined_call_operand.vmem [shape: f32[1,128], index: 4, kind: input, shape index: {}]
  %s5 = inlined_call_operand.vmem [shape: f32[1,128], index: 5, kind: input, shape index: {}]
  %s6 = inlined_call_operand.hbm [shape: f32[128,128], index: 6, kind: input, shape index: {}]
  %s7 = inlined_call_operand.vmem [shape: f32[4,128], index: 7, kind: input, shape index: {}]
  %s8 = inlined_call_operand.vmem [shape: f32[1,128], index: 8, kind: input, shape index: {}]
  %s9 = inlined_call_operand.vmem [shape: f32[1,128], index: 9, kind: input, shape index: {}]
  %s10 = inlined_call_operand.hbm [shape: f32[8,128], index: 10, kind: output, shape index: {}]
  %s11 = sld [smem:[#allocation0]]
  $region66: #{tpu_custom_call.1} parent=0
    _
  %s13 = ssub.s32 1, %s11
  %s14 = scalar_select 0, %s13, %s11
  $region1: #{tpu_custom_call.1} parent=0
    #allocation3 [shape = 'u8[65536]{0}', space=vmem, size = 0x10000, scoped, tag = 'input window, operand 2, single buffered']
    #allocation4 [shape = 's32[1]{0}', space=sflag, size = 0x4, scoped, tag = 'scoped memory for tpu_custom_call.1']
    #allocation5 [shape = 's32[1]{0}', space=sflag, size = 0x4, scoped, tag = 'scoped memory for tpu_custom_call.1']
    #allocation6 [shape = 'u8[65536]{0}', space=vmem, size = 0x10000, scoped, tag = 'input window, operand 6, single buffered']
    #allocation7 [shape = 's32[1]{0}', space=sflag, size = 0x4, scoped, tag = 'scoped memory for tpu_custom_call.1']
    #allocation8 [shape = 'u8[4096]{0}', space=vmem, size = 0x1000, scoped, tag = 'output window, operand 0, single buffered']
    %15 = vsyncpa [#allocation4], 0
    %16 = vsyncpa [#allocation7], 0
    %17 = vsyncpa [#allocation5], 0
    // Predicated region
    $region2: #{tpu_custom_call.1} parent=1 // pred_check
      _
    $region3: #{tpu_custom_call.1} parent=1 // pred_check_branch
      %19 = sbr.rel (0) target = $region5
    $region4: #{tpu_custom_call.1} parent=1 // pred_region
      _
    $region5: #{tpu_custom_call.1} parent=1 // pred_fallthru
      _
    // Predicated region
    $region6: #{tpu_custom_call.1} parent=1 // pred_check
      _
    $region7: #{tpu_custom_call.1} parent=1 // pred_check_branch
      %21 = sbr.rel (0) target = $region9
    $region8: #{tpu_custom_call.1} parent=1 // pred_region
      _
    $region9: #{tpu_custom_call.1} parent=1 // pred_fallthru
      _
    // Predicated region
    $region10: #{tpu_custom_call.1} parent=1 // pred_check
      _
    $region11: #{tpu_custom_call.1} parent=1 // pred_check_branch
      %23 = sbr.rel (0) target = $region13
    $region12: #{tpu_custom_call.1} parent=1 // pred_region
      %s25 = ssub.s32 2048, 2048
      %26 = vsyncadd [#allocation4], %s25
      %s27 = sshll.u32 [#allocation3], 4
      %s28 = int_to_ptr.vmem [resolvable:$true] %s27
      %33 = dma.hbm_to_vmem [thread:$0]  %s2, 2048, %s28, [#allocation4], 128, 128, 8
    $region13: #{tpu_custom_call.1} parent=1 // pred_fallthru
      _
    // Predicated region
    $region14: #{tpu_custom_call.1} parent=1 // pred_check
      _
    $region15: #{tpu_custom_call.1} parent=1 // pred_check_branch
      %35 = sbr.rel (0) target = $region17
    $region16: #{tpu_custom_call.1} parent=1 // pred_region
      _
    $region17: #{tpu_custom_call.1} parent=1 // pred_fallthru
      _
    // Predicated region
    $region18: #{tpu_custom_call.1} parent=1 // pred_check
      _
    $region19: #{tpu_custom_call.1} parent=1 // pred_check_branch
      %37 = sbr.rel (0) target = $region21
    $region20: #{tpu_custom_call.1} parent=1 // pred_region
      _
    $region21: #{tpu_custom_call.1} parent=1 // pred_fallthru
      _
    // Predicated region
    $region22: #{tpu_custom_call.1} parent=1 // pred_check
      _
    $region23: #{tpu_custom_call.1} parent=1 // pred_check_branch
      %39 = sbr.rel (0) target = $region25
    $region24: #{tpu_custom_call.1} parent=1 // pred_region
      _
    $region25: #{tpu_custom_call.1} parent=1 // pred_fallthru
      _
    // Predicated region
    $region26: #{tpu_custom_call.1} parent=1 // pred_check
      _
    $region27: #{tpu_custom_call.1} parent=1 // pred_check_branch
      %41 = sbr.rel (0) target = $region29
    $region28: #{tpu_custom_call.1} parent=1 // pred_region
      %s43 = ssub.s32 2048, 2048
      %44 = vsyncadd [#allocation7], %s43
      %s45 = sshll.u32 [#allocation6], 4
      %s46 = int_to_ptr.vmem [resolvable:$true] %s45
      %51 = dma.hbm_to_vmem [thread:$0]  %s6, 2048, %s46, [#allocation7], 128, 128, 8
    $region29: #{tpu_custom_call.1} parent=1 // pred_fallthru
      _
    // Predicated region
    $region30: #{tpu_custom_call.1} parent=1 // pred_check
      _
    $region31: #{tpu_custom_call.1} parent=1 // pred_check_branch
      %53 = sbr.rel (0) target = $region33
    $region32: #{tpu_custom_call.1} parent=1 // pred_region
      _
    $region33: #{tpu_custom_call.1} parent=1 // pred_fallthru
      _
    // Predicated region
    $region34: #{tpu_custom_call.1} parent=1 // pred_check
      _
    $region35: #{tpu_custom_call.1} parent=1 // pred_check_branch
      %55 = sbr.rel (0) target = $region37
    $region36: #{tpu_custom_call.1} parent=1 // pred_region
      _
    $region37: #{tpu_custom_call.1} parent=1 // pred_fallthru
      _
    // Predicated region
    $region38: #{tpu_custom_call.1} parent=1 // pred_check
      _
    $region39: #{tpu_custom_call.1} parent=1 // pred_check_branch
      %57 = sbr.rel (0) target = $region41
    $region40: #{tpu_custom_call.1} parent=1 // pred_region
      _
    $region41: #{tpu_custom_call.1} parent=1 // pred_fallthru
      _
    // Predicated region
    $region42: #{tpu_custom_call.1} parent=1 // pred_check
      _
    $region43: #{tpu_custom_call.1} parent=1 // pred_check_branch
      %59 = sbr.rel (0) target = $region45
    $region44: #{tpu_custom_call.1} parent=1 // pred_region
      %60 = dma.done [#allocation4], 2048
    $region45: #{tpu_custom_call.1} parent=1 // pred_fallthru
      _
    // Predicated region
    $region46: #{tpu_custom_call.1} parent=1 // pred_check
      _
    $region47: #{tpu_custom_call.1} parent=1 // pred_check_branch
      %62 = sbr.rel (0) target = $region49
    $region48: #{tpu_custom_call.1} parent=1 // pred_region
      %63 = dma.done [#allocation7], 2048
    $region49: #{tpu_custom_call.1} parent=1 // pred_fallthru
      _
    %p64 = scmp.eq.s32.totalorder 0, 0
    // Predicated region
    $region50: #{tpu_custom_call.1} parent=1 // pred_check
      %p65 = pneg %p64
    $region51: #{tpu_custom_call.1} parent=1 // pred_check_branch
      %67 = sbr.rel (%p65) target = $region53
    $region52: #{tpu_custom_call.1} parent=1 // pred_region
      %v68 = vld [vmem:[%s0] sm:$0xff]
      %v69 = vld [vmem:[%s3] sm:$0xf]
      %vm70 = vcmask 31744
      %v72 = vsel %vm70, %v68, 0
      %vm74 = vcmask 1043456
      %v76 = vsel %vm74, %v69, 0
      %78 = vmatprep.subr.mxu0 0.0
      %79 = vmatpush1.msra.mxu0 %v76
      %80 = vmatprep.subr.mxu0 0.0
      %81 = vmatpush1.msra.mxu0 0.0
      %82 = vmatprep.subr.mxu0 0.0
      %83 = vmatpush1.msra.mxu0 0.0
      %84 = vmatprep.subr.mxu0 0.0
      %85 = vmatpush1.msra.mxu0 0.0
      %86 = vmatprep.subr.mxu0 0.0
      %87 = vmatpush1.msra.mxu0 0.0
      %88 = vmatprep.subr.mxu0 0.0
      %89 = vmatpush1.msra.mxu0 0.0
      %90 = vmatprep.subr.mxu0 0.0
      %91 = vmatpush1.msra.mxu0 0.0
      %92 = vmatprep.subr.mxu0 0.0
      %93 = vmatpush1.msra.mxu0 0.0
      %94 = vmatprep.subr.mxu0 0.0
      %95 = vmatpush1.msra.mxu0 0.0
      %96 = vmatprep.subr.mxu0 0.0
      %97 = vmatpush1.msra.mxu0 0.0
      %98 = vmatprep.subr.mxu0 0.0
      %99 = vmatpush1.msra.mxu0 0.0
      %100 = vmatprep.subr.mxu0 0.0
      %101 = vmatpush1.msra.mxu0 0.0
      %102 = vmatprep.subr.mxu0 0.0
      %103 = vmatpush1.msra.mxu0 0.0
      %104 = vmatprep.subr.mxu0 0.0
      %105 = vmatpush1.msra.mxu0 0.0
      %106 = vmatprep.subr.mxu0 0.0
      %107 = vmatpush1.msra.mxu0 0.0
      %108 = vmatprep.subr.mxu0 0.0
      %109 = vmatpush1.msra.mxu0 0.0
      %110 = vmatprep.subr.mxu0 0.0
      %111 = vmatpush1.msra.mxu0 0.0
      %112 = vmatprep.subr.mxu0 0.0
      %113 = vmatpush1.msra.mxu0 0.0
      %114 = vmatprep.subr.mxu0 0.0
      %115 = vmatpush1.msra.mxu0 0.0
      %116 = vmatprep.subr.mxu0 0.0
      %117 = vmatpush1.msra.mxu0 0.0
      %118 = vmatprep.subr.mxu0 0.0
      %119 = vmatpush1.msra.mxu0 0.0
      %120 = vmatprep.subr.mxu0 0.0
      %121 = vmatpush1.msra.mxu0 0.0
      %122 = vmatprep.subr.mxu0 0.0
      %123 = vmatpush1.msra.mxu0 0.0
      %124 = vmatprep.subr.mxu0 0.0
      %125 = vmatpush1.msra.mxu0 0.0
      %126 = vmatprep.subr.mxu0 0.0
      %127 = vmatpush1.msra.mxu0 0.0
      %128 = vmatprep.subr.mxu0 0.0
      %129 = vmatpush1.msra.mxu0 0.0
      %130 = vmatprep.subr.mxu0 0.0
      %131 = vmatpush1.msra.mxu0 0.0
      %132 = vmatprep.subr.mxu0 0.0
      %133 = vmatpush1.msra.mxu0 0.0
      %134 = vmatprep.subr.mxu0 0.0
      %135 = vmatpush1.msra.mxu0 0.0
      %136 = vmatprep.subr.mxu0 0.0
      %137 = vmatpush1.msra.mxu0 0.0
      %138 = vmatprep.subr.mxu0 0.0
      %139 = vmatpush1.msra.mxu0 0.0
      %140 = vmatprep.subr.mxu0 0.0
      %141 = vmatpush1.msra.mxu0 0.0
      %142 = vmatprep.mubr.f32.mxu0 0.0
      %143 = vmatmul.mubr.f32.gmra.mrb[0].mxu0 %v72
      %v144 = vpop.f32.mrb[0].mxu0
      %v145 = vadd.f32 0.0, %v144
      %v146 = vpop.f32.mrb[0].mxu0
      %147 = vdwg.mxu0
      %148 = vst [vmem:[#allocation2] sm:$0xff] %v145
    $region53: #{tpu_custom_call.1} parent=1 // pred_fallthru
      _
    %v149 = vld [vmem:[#allocation2] sm:$0xff]
    %v150 = vld [vmem:[%s1] sm:$0xff]
    %v151 = vld [vmem:[#allocation3] sm:$0xff]
    %v152 = vld [vmem:[#allocation3 + $0x8] sm:$0xff]
    %v153 = vld [vmem:[#allocation3 + $0x10] sm:$0xff]
    %v154 = vld [vmem:[#allocation3 + $0x18] sm:$0xff]
    %v155 = vld [vmem:[#allocation3 + $0x20] sm:$0xff]
    %v156 = vld [vmem:[#allocation3 + $0x28] sm:$0xff]
    %v157 = vld [vmem:[#allocation3 + $0x30] sm:$0xff]
    %v158 = vld [vmem:[#allocation3 + $0x38] sm:$0xff]
    %v159 = vld [vmem:[#allocation3 + $0x40] sm:$0xff]
    %v160 = vld [vmem:[#allocation3 + $0x48] sm:$0xff]
    %v161 = vld [vmem:[#allocation3 + $0x50] sm:$0xff]
    %v162 = vld [vmem:[#allocation3 + $0x58] sm:$0xff]
    %v163 = vld [vmem:[#allocation3 + $0x60] sm:$0xff]
    %v164 = vld [vmem:[#allocation3 + $0x68] sm:$0xff]
    %v165 = vld [vmem:[#allocation3 + $0x70] sm:$0xff]
    %v166 = vld [vmem:[#allocation3 + $0x78] sm:$0xff]
    %167 = vmatprep.subr.mxu0 0.0
    %168 = vmatpush1.msra.mxu0 %v151
    %169 = vmatprep.subr.mxu0 0.0
    %170 = vmatpush1.msra.mxu0 %v152
    %171 = vmatprep.subr.mxu0 0.0
    %172 = vmatpush1.msra.mxu0 %v153
    %173 = vmatprep.subr.mxu0 0.0
    %174 = vmatpush1.msra.mxu0 %v154
    %175 = vmatprep.subr.mxu0 0.0
    %176 = vmatpush1.msra.mxu0 %v155
    %177 = vmatprep.subr.mxu0 0.0
    %178 = vmatpush1.msra.mxu0 %v156
    %179 = vmatprep.subr.mxu0 0.0
    %180 = vmatpush1.msra.mxu0 %v157
    %181 = vmatprep.subr.mxu0 0.0
    %182 = vmatpush1.msra.mxu0 %v158
    %183 = vmatprep.subr.mxu0 0.0
    %184 = vmatpush1.msra.mxu0 %v159
    %185 = vmatprep.subr.mxu0 0.0
    %186 = vmatpush1.msra.mxu0 %v160
    %187 = vmatprep.subr.mxu0 0.0
    %188 = vmatpush1.msra.mxu0 %v161
    %189 = vmatprep.subr.mxu0 0.0
    %190 = vmatpush1.msra.mxu0 %v162
    %191 = vmatprep.subr.mxu0 0.0
    %192 = vmatpush1.msra.mxu0 %v163
    %193 = vmatprep.subr.mxu0 0.0
    %194 = vmatpush1.msra.mxu0 %v164
    %195 = vmatprep.subr.mxu0 0.0
    %196 = vmatpush1.msra.mxu0 %v165
    %197 = vmatprep.subr.mxu0 0.0
    %198 = vmatpush1.msra.mxu0 %v166
    %199 = vmatprep.subr.mxu0 0.0
    %200 = vmatpush1.msra.mxu0 0.0
    %201 = vmatprep.subr.mxu0 0.0
    %202 = vmatpush1.msra.mxu0 0.0
    %203 = vmatprep.subr.mxu0 0.0
    %204 = vmatpush1.msra.mxu0 0.0
    %205 = vmatprep.subr.mxu0 0.0
    %206 = vmatpush1.msra.mxu0 0.0
    %207 = vmatprep.subr.mxu0 0.0
    %208 = vmatpush1.msra.mxu0 0.0
    %209 = vmatprep.subr.mxu0 0.0
    %210 = vmatpush1.msra.mxu0 0.0
    %211 = vmatprep.subr.mxu0 0.0
    %212 = vmatpush1.msra.mxu0 0.0
    %213 = vmatprep.subr.mxu0 0.0
    %214 = vmatpush1.msra.mxu0 0.0
    %215 = vmatprep.subr.mxu0 0.0
    %216 = vmatpush1.msra.mxu0 0.0
    %217 = vmatprep.subr.mxu0 0.0
    %218 = vmatpush1.msra.mxu0 0.0
    %219 = vmatprep.subr.mxu0 0.0
    %220 = vmatpush1.msra.mxu0 0.0
    %221 = vmatprep.subr.mxu0 0.0
    %222 = vmatpush1.msra.mxu0 0.0
    %223 = vmatprep.subr.mxu0 0.0
    %224 = vmatpush1.msra.mxu0 0.0
    %225 = vmatprep.subr.mxu0 0.0
    %226 = vmatpush1.msra.mxu0 0.0
    %227 = vmatprep.subr.mxu0 0.0
    %228 = vmatpush1.msra.mxu0 0.0
    %229 = vmatprep.subr.mxu0 0.0
    %230 = vmatpush1.msra.mxu0 0.0
    %231 = vmatprep.mubr.f32.mxu0 0.0
    %232 = vmatmul.mubr.f32.gmra.mrb[0].mxu0 %v150
    %v233 = vpop.f32.mrb[0].mxu0
    %v234 = vadd.f32 0.0, %v233
    %v235 = vpop.f32.mrb[0].mxu0
    %236 = vdwg.mxu0
    %v237 = vadd.f32 %v149, %v234
    %238 = vst [vmem:[#allocation2] sm:$0xff] %v237
    // Predicated region
    $region54: #{tpu_custom_call.1} parent=1 // pred_check
      %p239 = pneg %p64
    $region55: #{tpu_custom_call.1} parent=1 // pred_check_branch
      %241 = sbr.rel (%p239) target = $region57
    $region56: #{tpu_custom_call.1} parent=1 // pred_region
      %v242 = vld [vmem:[%s0] sm:$0xff]
      %v243 = vld [vmem:[#allocation2] sm:$0xff]
      %v244 = vrot.slane %v243, 4
      %v245 = vadd.f32 %v243, %v244
      %v246 = vrot.slane %v245, 2
      %v247 = vadd.f32 %v245, %v246
      %v248 = vrot.slane %v247, 1
      %v249 = vadd.f32 %v247, %v248
      %v250 = vrcp.pop 8.0
      %v251 = vmul.f32 %v249, %v250
      %v252 = vsub.f32 %v243, %v251
      %v253 = vmul.f32 %v252, %v252
      %v254 = vrot.slane %v253, 4
      %v255 = vadd.f32 %v253, %v254
      %v256 = vrot.slane %v255, 2
      %v257 = vadd.f32 %v255, %v256
      %v258 = vrot.slane %v257, 1
      %v259 = vadd.f32 %v257, %v258
      %v260 = vmul.f32 %v259, %v250
      %v261 = vld [vmem:[%s4] sm:$0x1]
      %v262 = vadd.f32 %v260, 0.001
      %v263 = vrsqrt.pop %v262
      %v264 = vmul.f32 %v261, %v263
      %v266 = vlaneseq
      %v267 = vshrl.u32 %v266, 7
      %v268 = vsub.s32 0, %v267
      %v269 = vrot.slane %v264, %v268
      %v271 = vmul.f32 %v252, %v269
      %v272 = vld [vmem:[%s5] sm:$0x1]
      %v274 = vlaneseq
      %v275 = vshrl.u32 %v274, 7
      %v276 = vsub.s32 0, %v275
      %v277 = vrot.slane %v272, %v276
      %v279 = vadd.f32 %v271, %v277
      %v280 = vmax.f32 %v279, 0.0
      %v281 = vld [vmem:[#allocation6] sm:$0xff]
      %v282 = vld [vmem:[#allocation6 + $0x8] sm:$0xff]
      %v283 = vld [vmem:[#allocation6 + $0x10] sm:$0xff]
      %v284 = vld [vmem:[#allocation6 + $0x18] sm:$0xff]
      %v285 = vld [vmem:[#allocation6 + $0x20] sm:$0xff]
      %v286 = vld [vmem:[#allocation6 + $0x28] sm:$0xff]
      %v287 = vld [vmem:[#allocation6 + $0x30] sm:$0xff]
      %v288 = vld [vmem:[#allocation6 + $0x38] sm:$0xff]
      %v289 = vld [vmem:[#allocation6 + $0x40] sm:$0xff]
      %v290 = vld [vmem:[#allocation6 + $0x48] sm:$0xff]
      %v291 = vld [vmem:[#allocation6 + $0x50] sm:$0xff]
      %v292 = vld [vmem:[#allocation6 + $0x58] sm:$0xff]
      %v293 = vld [vmem:[#allocation6 + $0x60] sm:$0xff]
      %v294 = vld [vmem:[#allocation6 + $0x68] sm:$0xff]
      %v295 = vld [vmem:[#allocation6 + $0x70] sm:$0xff]
      %v296 = vld [vmem:[#allocation6 + $0x78] sm:$0xff]
      %v297 = vld [vmem:[%s7] sm:$0xf]
      %vm298 = vcmask 31744
      %v300 = vsel %vm298, %v242, 0
      %vm302 = vcmask 1043456
      %v304 = vsel %vm302, %v297, 0
      %306 = vmatprep.subr.mxu0 0.0
      %307 = vmatpush1.msra.mxu0 %v304
      %308 = vmatprep.subr.mxu0 0.0
      %309 = vmatpush1.msra.mxu0 0.0
      %310 = vmatprep.subr.mxu0 0.0
      %311 = vmatpush1.msra.mxu0 0.0
      %312 = vmatprep.subr.mxu0 0.0
      %313 = vmatpush1.msra.mxu0 0.0
      %314 = vmatprep.subr.mxu0 0.0
      %315 = vmatpush1.msra.mxu0 0.0
      %316 = vmatprep.subr.mxu0 0.0
      %317 = vmatpush1.msra.mxu0 0.0
      %318 = vmatprep.subr.mxu0 0.0
      %319 = vmatpush1.msra.mxu0 0.0
      %320 = vmatprep.subr.mxu0 0.0
      %321 = vmatpush1.msra.mxu0 0.0
      %322 = vmatprep.subr.mxu0 0.0
      %323 = vmatpush1.msra.mxu0 0.0
      %324 = vmatprep.subr.mxu0 0.0
      %325 = vmatpush1.msra.mxu0 0.0
      %326 = vmatprep.subr.mxu0 0.0
      %327 = vmatpush1.msra.mxu0 0.0
      %328 = vmatprep.subr.mxu0 0.0
      %329 = vmatpush1.msra.mxu0 0.0
      %330 = vmatprep.subr.mxu0 0.0
      %331 = vmatpush1.msra.mxu0 0.0
      %332 = vmatprep.subr.mxu0 0.0
      %333 = vmatpush1.msra.mxu0 0.0
      %334 = vmatprep.subr.mxu0 0.0
      %335 = vmatpush1.msra.mxu0 0.0
      %336 = vmatprep.subr.mxu0 0.0
      %337 = vmatpush1.msra.mxu0 0.0
      %338 = vmatprep.subr.mxu0 0.0
      %339 = vmatpush1.msra.mxu0 0.0
      %340 = vmatprep.subr.mxu0 0.0
      %341 = vmatpush1.msra.mxu0 0.0
      %342 = vmatprep.subr.mxu0 0.0
      %343 = vmatpush1.msra.mxu0 0.0
      %344 = vmatprep.subr.mxu0 0.0
      %345 = vmatpush1.msra.mxu0 0.0
      %346 = vmatprep.subr.mxu0 0.0
      %347 = vmatpush1.msra.mxu0 0.0
      %348 = vmatprep.subr.mxu0 0.0
      %349 = vmatpush1.msra.mxu0 0.0
      %350 = vmatprep.subr.mxu0 0.0
      %351 = vmatpush1.msra.mxu0 0.0
      %352 = vmatprep.subr.mxu0 0.0
      %353 = vmatpush1.msra.mxu0 0.0
      %354 = vmatprep.subr.mxu0 0.0
      %355 = vmatpush1.msra.mxu0 0.0
      %356 = vmatprep.subr.mxu0 0.0
      %357 = vmatpush1.msra.mxu0 0.0
      %358 = vmatprep.subr.mxu0 0.0
      %359 = vmatpush1.msra.mxu0 0.0
      %360 = vmatprep.subr.mxu0 0.0
      %361 = vmatpush1.msra.mxu0 0.0
      %362 = vmatprep.subr.mxu0 0.0
      %363 = vmatpush1.msra.mxu0 0.0
      %364 = vmatprep.subr.mxu0 0.0
      %365 = vmatpush1.msra.mxu0 0.0
      %366 = vmatprep.subr.mxu0 0.0
      %367 = vmatpush1.msra.mxu0 0.0
      %368 = vmatprep.subr.mxu0 0.0
      %369 = vmatpush1.msra.mxu0 0.0
      %370 = vmatprep.mubr.f32.mxu0 0.0
      %371 = vmatmul.mubr.f32.gmra.mrb[0].mxu0 %v300
      %v372 = vpop.f32.mrb[0].mxu0
      %v373 = vadd.f32 0.0, %v372
      %v374 = vpop.f32.mrb[0].mxu0
      %375 = vdwg.mxu0
      %376 = vmatprep.subr.mxu0 0.0
      %377 = vmatpush1.msra.mxu0 %v281
      %378 = vmatprep.subr.mxu0 0.0
      %379 = vmatpush1.msra.mxu0 %v282
      %380 = vmatprep.subr.mxu0 0.0
      %381 = vmatpush1.msra.mxu0 %v283
      %382 = vmatprep.subr.mxu0 0.0
      %383 = vmatpush1.msra.mxu0 %v284
      %384 = vmatprep.subr.mxu0 0.0
      %385 = vmatpush1.msra.mxu0 %v285
      %386 = vmatprep.subr.mxu0 0.0
      %387 = vmatpush1.msra.mxu0 %v286
      %388 = vmatprep.subr.mxu0 0.0
      %389 = vmatpush1.msra.mxu0 %v287
      %390 = vmatprep.subr.mxu0 0.0
      %391 = vmatpush1.msra.mxu0 %v288
      %392 = vmatprep.subr.mxu0 0.0
      %393 = vmatpush1.msra.mxu0 %v289
      %394 = vmatprep.subr.mxu0 0.0
      %395 = vmatpush1.msra.mxu0 %v290
      %396 = vmatprep.subr.mxu0 0.0
      %397 = vmatpush1.msra.mxu0 %v291
      %398 = vmatprep.subr.mxu0 0.0
      %399 = vmatpush1.msra.mxu0 %v292
      %400 = vmatprep.subr.mxu0 0.0
      %401 = vmatpush1.msra.mxu0 %v293
      %402 = vmatprep.subr.mxu0 0.0
      %403 = vmatpush1.msra.mxu0 %v294
      %404 = vmatprep.subr.mxu0 0.0
      %405 = vmatpush1.msra.mxu0 %v295
      %406 = vmatprep.subr.mxu0 0.0
      %407 = vmatpush1.msra.mxu0 %v296
      %408 = vmatprep.subr.mxu0 0.0
      %409 = vmatpush1.msra.mxu0 0.0
      %410 = vmatprep.subr.mxu0 0.0
      %411 = vmatpush1.msra.mxu0 0.0
      %412 = vmatprep.subr.mxu0 0.0
      %413 = vmatpush1.msra.mxu0 0.0
      %414 = vmatprep.subr.mxu0 0.0
      %415 = vmatpush1.msra.mxu0 0.0
      %416 = vmatprep.subr.mxu0 0.0
      %417 = vmatpush1.msra.mxu0 0.0
      %418 = vmatprep.subr.mxu0 0.0
      %419 = vmatpush1.msra.mxu0 0.0
      %420 = vmatprep.subr.mxu0 0.0
      %421 = vmatpush1.msra.mxu0 0.0
      %422 = vmatprep.subr.mxu0 0.0
      %423 = vmatpush1.msra.mxu0 0.0
      %424 = vmatprep.subr.mxu0 0.0
      %425 = vmatpush1.msra.mxu0 0.0
      %426 = vmatprep.subr.mxu0 0.0
      %427 = vmatpush1.msra.mxu0 0.0
      %428 = vmatprep.subr.mxu0 0.0
      %429 = vmatpush1.msra.mxu0 0.0
      %430 = vmatprep.subr.mxu0 0.0
      %431 = vmatpush1.msra.mxu0 0.0
      %432 = vmatprep.subr.mxu0 0.0
      %433 = vmatpush1.msra.mxu0 0.0
      %434 = vmatprep.subr.mxu0 0.0
      %435 = vmatpush1.msra.mxu0 0.0
      %436 = vmatprep.subr.mxu0 0.0
      %437 = vmatpush1.msra.mxu0 0.0
      %438 = vmatprep.subr.mxu0 0.0
      %439 = vmatpush1.msra.mxu0 0.0
      %440 = vmatprep.mubr.f32.mxu0 0.0
      %441 = vmatmul.mubr.f32.gmra.mrb[0].mxu0 %v280
      %v442 = vpop.f32.mrb[0].mxu0
      %v443 = vadd.f32 %v373, %v442
      %v444 = vpop.f32.mrb[0].mxu0
      %445 = vdwg.mxu0
      %v446 = vrot.slane %v443, 4
      %v447 = vadd.f32 %v443, %v446
      %v448 = vrot.slane %v447, 2
      %v449 = vadd.f32 %v447, %v448
      %v450 = vrot.slane %v449, 1
      %v451 = vadd.f32 %v449, %v450
      %v452 = vmul.f32 %v451, %v250
      %v453 = vsub.f32 %v443, %v452
      %v454 = vmul.f32 %v453, %v453
      %v455 = vrot.slane %v454, 4
      %v456 = vadd.f32 %v454, %v455
      %v457 = vrot.slane %v456, 2
      %v458 = vadd.f32 %v456, %v457
      %v459 = vrot.slane %v458, 1
      %v460 = vadd.f32 %v458, %v459
      %v461 = vmul.f32 %v460, %v250
      %v462 = vld [vmem:[%s8] sm:$0x1]
      %v463 = vadd.f32 %v461, 0.001
      %v464 = vrsqrt.pop %v463
      %v465 = vmul.f32 %v462, %v464
      %v467 = vlaneseq
      %v468 = vshrl.u32 %v467, 7
      %v469 = vsub.s32 0, %v468
      %v470 = vrot.slane %v465, %v469
      %v472 = vmul.f32 %v453, %v470
      %v473 = vld [vmem:[%s9] sm:$0x1]
      %v475 = vlaneseq
      %v476 = vshrl.u32 %v475, 7
      %v477 = vsub.s32 0, %v476
      %v478 = vrot.slane %v473, %v477
      %v480 = vadd.f32 %v472, %v478
      %v481 = vmax.f32 %v480, 0.0
      %482 = vst [vmem:[#allocation8] sm:$0xff] %v481
    $region57: #{tpu_custom_call.1} parent=1 // pred_fallthru
      _
    // Predicated region
    $region58: #{tpu_custom_call.1} parent=1 // pred_check
      _
    $region59: #{tpu_custom_call.1} parent=1 // pred_check_branch
      %484 = sbr.rel (0) target = $region61
    $region60: #{tpu_custom_call.1} parent=1 // pred_region
      %s486 = ssub.s32 128, 128
      %487 = vsyncadd [#allocation5], %s486
      %s489 = sshll.u32 [#allocation8], 4
      %s490 = int_to_ptr.vmem [resolvable:$true] %s489
      %492 = dma.vmem_to_hbm [thread:$0]  %s490, 128, %s10, [#allocation5]
    $region61: #{tpu_custom_call.1} parent=1 // pred_fallthru
      _
    // Predicated region
    $region62: #{tpu_custom_call.1} parent=1 // pred_check
      _
    $region63: #{tpu_custom_call.1} parent=1 // pred_check_branch
      %494 = sbr.rel (0) target = $region65
    $region64: #{tpu_custom_call.1} parent=1 // pred_region
      %495 = dma.done [#allocation5], 128
    $region65: #{tpu_custom_call.1} parent=1 // pred_fallthru
      _
    %496 = vsyncpa [#allocation4], 1
    %497 = vsyncpa [#allocation7], 1
    %498 = vsyncpa [#allocation5], 1

</llo_original>
